<compile_context>
chip_gen: v5e
topology: v5e:2x2
jax: 0.10.0
libtpu: 0.0.40
codegen_flags: <defaults>
</compile_context>

<pallas_src>
import jax
import jax.numpy as jnp
from jax.experimental import pallas as pl
from jax.experimental.pallas import tpu as pltpu


# ----------------------------------------------------------------------------
# Fused Pallas kernel
# ----------------------------------------------------------------------------

def _vmem_spec():
    return pl.BlockSpec(memory_space=pltpu.MemorySpace.VMEM)


def _split_linear(x_a, x_b, w_a, w_b, b):
    # Linear(2F -> N) on concat([x_a, x_b]) expressed as two dots (no concat).
    return (jnp.dot(x_a, w_a, preferred_element_type=jnp.float32)
            + jnp.dot(x_b, w_b, preferred_element_type=jnp.float32)
            + b)


def _make_fused_kernel(num_desc, img_idx, txt_idx, feature_dim):
    """Build the fused forward kernel for a static descendant set."""
    D, F = num_desc, feature_dim

    def kernel(*refs):
        # ---- unpack refs (layout fixed by the wrapper) ---------------------
        idx = 0
        desc_x = refs[idx:idx + D]; idx += D          # D x (B, F) orig feats
        interv_x = refs[idx]; idx += 1                # (B, F) intervention
        img_x = refs[idx]; idx += 1                   # (B, F) orig image
        txt_x = refs[idx]; idx += 1                   # (B, F) orig text
        gen_p = []
        for _ in range(D):                            # 7 params per generator
            gen_p.append(refs[idx:idx + 7]); idx += 7
        fus_p = refs[idx:idx + 5]; idx += 5           # fusion params
        eff_p = refs[idx:idx + 5]; idx += 5           # effect params
        o_ref = refs[idx]                             # (B, (D+1)*F) output

        xi = interv_x[...]

        # ---- generators: Linear(2F->F) -> LayerNorm -> ReLU -> Linear(F->F)
        cf = []
        for i in range(D):
            w1a, w1b, b1, gamma, beta, w2, b2 = gen_p[i]
            h = _split_linear(desc_x[i][...], xi, w1a[...], w1b[...], b1[...])
            mean = jnp.mean(h, axis=-1, keepdims=True)
            var = jnp.mean(jnp.square(h - mean), axis=-1, keepdims=True)
            h = (h - mean) * jax.lax.rsqrt(var + 1e-5)    # torch LN eps=1e-5
            h = h * gamma[...] + beta[...]
            h = jnp.maximum(h, 0.0)
            cf.append(jnp.dot(h, w2[...], preferred_element_type=jnp.float32)
                      + b2[...])

        # ---- feature fusion: Linear(2F->F) -> ReLU -> Linear(F->F) ---------
        fw1a, fw1b, fb1, fw2, fb2 = fus_p

        def fuse(a, b):
            h = _split_linear(a, b, fw1a[...], fw1b[...], fb1[...])
            h = jnp.maximum(h, 0.0)
            return (jnp.dot(h, fw2[...], preferred_element_type=jnp.float32)
                    + fb2[...])

        orig_fused = fuse(img_x[...], txt_x[...])
        cf_fused = fuse(cf[img_idx], cf[txt_idx])

        # ---- effect estimator: Linear(2F->F) -> ReLU -> Linear(F->1) -> sig
        ew1a, ew1b, eb1, ew2, eb2 = eff_p
        h = _split_linear(orig_fused, cf_fused, ew1a[...], ew1b[...], eb1[...])
        h = jnp.maximum(h, 0.0)
        logit = (jnp.dot(h, ew2[...], preferred_element_type=jnp.float32)
                 + eb2[...])                               # (B, 1)
        effect = jax.nn.sigmoid(logit)

        # ---- one lane-dense store ------------------------------------------
        eff_block = jnp.broadcast_to(effect, (effect.shape[0], F))
        o_ref[...] = jnp.concatenate(cf + [eff_block],
                                     axis=-1).astype(o_ref.dtype)

    return kernel


# ----------------------------------------------------------------------------
# Parameter construction (deterministic, PyTorch-style uniform init,
# Linear(2F->F) weights stored pre-split into their two F-row halves)
# ----------------------------------------------------------------------------

def _linear_params(key, fan_in, fan_out, split=None):
    kw, kb = jax.random.split(key)
    bound = 1.0 / (fan_in ** 0.5)
    w = jax.random.uniform(kw, (fan_in, fan_out), jnp.float32, -bound, bound)
    b = jax.random.uniform(kb, (1, fan_out), jnp.float32, -bound, bound)
    if split is None:
        return w, b
    return w[:split], w[split:], b


def init_params(key, feature_dim):
    F = feature_dim
    modalities = ('image', 'text', 'spatial', 'action')
    keys = jax.random.split(key, len(modalities) + 2)
    params = {'feature_dim': F, 'generators': {}}
    for m, k in zip(modalities, keys[:len(modalities)]):
        k1, k2 = jax.random.split(k)
        w1a, w1b, b1 = _linear_params(k1, 2 * F, F, split=F)
        w2, b2 = _linear_params(k2, F, F)
        gamma = jnp.ones((1, F), jnp.float32)
        beta = jnp.zeros((1, F), jnp.float32)
        params['generators'][m] = (w1a, w1b, b1, gamma, beta, w2, b2)
    kf1, kf2 = jax.random.split(keys[-2])
    params['fusion'] = (*_linear_params(kf1, 2 * F, F, split=F),
                        *_linear_params(kf2, F, F))
    ke1, ke2 = jax.random.split(keys[-1])
    params['effect'] = (*_linear_params(ke1, 2 * F, F, split=F),
                        *_linear_params(ke2, F, 1))
    return params


# ----------------------------------------------------------------------------
# Causal graph (synthetic, plain Python glue — mirrors the PyTorch interface)
# ----------------------------------------------------------------------------

class SimpleCausalGraph:
    def __init__(self):
        self._descendants = {
            'spatial': ['image', 'text', 'action'],
            'image': ['text', 'action'],
            'text': ['action'],
            'action': [],
        }

    def get_descendants(self, var):
        return list(self._descendants.get(var, []))


# ----------------------------------------------------------------------------
# Forward pass (one fused Pallas kernel; wrapper only slices the output slab)
# ----------------------------------------------------------------------------

def counterfactual_forward(params, graph, features, intervention_var):
    F = params['feature_dim']
    desc_vars = [v for v in graph.get_descendants(intervention_var)
                 if v in params['generators']]
    D = len(desc_vars)
    B = features['image'].shape[0]
    # compute_counterfactual_effect requires cf 'image' and 'text' (same as
    # the PyTorch reference, which would KeyError otherwise).
    img_idx = desc_vars.index('image')
    txt_idx = desc_vars.index('text')

    args = [features[v] for v in desc_vars]
    args += [features[intervention_var], features['image'], features['text']]
    for v in desc_vars:
        args += list(params['generators'][v])
    args += list(params['fusion'])
    args += list(params['effect'])

    out_w = (D + 1) * F
    kernel = _make_fused_kernel(D, img_idx, txt_idx, F)
    out = pl.pallas_call(
        kernel,
        out_shape=jax.ShapeDtypeStruct((B, out_w), jnp.float32),
        in_specs=[_vmem_spec() for _ in args],
        out_specs=_vmem_spec(),
    )(*args)

    cf_features = {v: out[:, i * F:(i + 1) * F]
                   for i, v in enumerate(desc_vars)}
    effect = out[:, D * F:D * F + 1]
    return cf_features, effect


# ----------------------------------------------------------------------------
# Main
# ----------------------------------------------------------------------------

if __name__ == "__main__":
    B = 8          # batch
    F = 32         # feature_dim

    key = jax.random.PRNGKey(0)
    kp, kf = jax.random.split(key)
    params = init_params(kp, F)

    fkeys = jax.random.split(kf, 4)
    features = {
        'image':   jax.random.normal(fkeys[0], (B, F), jnp.float32),
        'text':    jax.random.normal(fkeys[1], (B, F), jnp.float32),
        'spatial': jax.random.normal(fkeys[2], (B, F), jnp.float32),
        'action':  jax.random.normal(fkeys[3], (B, F), jnp.float32),
    }

    graph = SimpleCausalGraph()
    cf_features, effect = counterfactual_forward(params, graph, features,
                                                 intervention_var='spatial')

    for v in cf_features.values():
        jax.block_until_ready(v)
    jax.block_until_ready(effect)

    assert effect.shape == (B, 1)
    assert set(cf_features.keys()) == {'image', 'text', 'action'}
    assert all(v.shape == (B, F) for v in cf_features.values())
    assert bool(jnp.all((effect >= 0.0) & (effect <= 1.0)))

    print("KERNEL_OK")
</pallas_src>

<mosaic_0001>
module attributes {stable_mosaic.version = 11 : i64} {
  func.func @kernel(%arg0: memref<8x32xf32, #tpu.memory_space<vmem>>, %arg1: memref<8x32xf32, #tpu.memory_space<vmem>>, %arg2: memref<8x32xf32, #tpu.memory_space<vmem>>, %arg3: memref<8x32xf32, #tpu.memory_space<vmem>>, %arg4: memref<8x32xf32, #tpu.memory_space<vmem>>, %arg5: memref<8x32xf32, #tpu.memory_space<vmem>>, %arg6: memref<32x32xf32, #tpu.memory_space<vmem>>, %arg7: memref<32x32xf32, #tpu.memory_space<vmem>>, %arg8: memref<1x32xf32, #tpu.memory_space<vmem>>, %arg9: memref<1x32xf32, #tpu.memory_space<vmem>>, %arg10: memref<1x32xf32, #tpu.memory_space<vmem>>, %arg11: memref<32x32xf32, #tpu.memory_space<vmem>>, %arg12: memref<1x32xf32, #tpu.memory_space<vmem>>, %arg13: memref<32x32xf32, #tpu.memory_space<vmem>>, %arg14: memref<32x32xf32, #tpu.memory_space<vmem>>, %arg15: memref<1x32xf32, #tpu.memory_space<vmem>>, %arg16: memref<1x32xf32, #tpu.memory_space<vmem>>, %arg17: memref<1x32xf32, #tpu.memory_space<vmem>>, %arg18: memref<32x32xf32, #tpu.memory_space<vmem>>, %arg19: memref<1x32xf32, #tpu.memory_space<vmem>>, %arg20: memref<32x32xf32, #tpu.memory_space<vmem>>, %arg21: memref<32x32xf32, #tpu.memory_space<vmem>>, %arg22: memref<1x32xf32, #tpu.memory_space<vmem>>, %arg23: memref<1x32xf32, #tpu.memory_space<vmem>>, %arg24: memref<1x32xf32, #tpu.memory_space<vmem>>, %arg25: memref<32x32xf32, #tpu.memory_space<vmem>>, %arg26: memref<1x32xf32, #tpu.memory_space<vmem>>, %arg27: memref<32x32xf32, #tpu.memory_space<vmem>>, %arg28: memref<32x32xf32, #tpu.memory_space<vmem>>, %arg29: memref<1x32xf32, #tpu.memory_space<vmem>>, %arg30: memref<32x32xf32, #tpu.memory_space<vmem>>, %arg31: memref<1x32xf32, #tpu.memory_space<vmem>>, %arg32: memref<32x32xf32, #tpu.memory_space<vmem>>, %arg33: memref<32x32xf32, #tpu.memory_space<vmem>>, %arg34: memref<1x32xf32, #tpu.memory_space<vmem>>, %arg35: memref<32x1xf32, #tpu.memory_space<vmem>>, %arg36: memref<1x1xf32, #tpu.memory_space<vmem>>, %arg37: memref<8x128xf32, #tpu.memory_space<vmem>>) attributes {dimension_semantics = [], scalar_prefetch = 0 : i64, scratch_operands = 0 : i64, tpu.core_type = #tpu.core_type<tc>} {
    %c0 = arith.constant 0 : index
    %c0_0 = arith.constant 0 : index
    %0 = vector.load %arg3[%c0, %c0_0] : memref<8x32xf32, #tpu.memory_space<vmem>>, vector<8x32xf32>
    %c0_1 = arith.constant 0 : index
    %c0_2 = arith.constant 0 : index
    %1 = vector.load %arg0[%c0_1, %c0_2] : memref<8x32xf32, #tpu.memory_space<vmem>>, vector<8x32xf32>
    %c0_3 = arith.constant 0 : index
    %c0_4 = arith.constant 0 : index
    %2 = vector.load %arg6[%c0_3, %c0_4] : memref<32x32xf32, #tpu.memory_space<vmem>>, vector<32x32xf32>
    %c0_5 = arith.constant 0 : index
    %c0_6 = arith.constant 0 : index
    %3 = vector.load %arg7[%c0_5, %c0_6] : memref<32x32xf32, #tpu.memory_space<vmem>>, vector<32x32xf32>
    %c0_7 = arith.constant 0 : index
    %c0_8 = arith.constant 0 : index
    %4 = vector.load %arg8[%c0_7, %c0_8] : memref<1x32xf32, #tpu.memory_space<vmem>>, vector<1x32xf32>
    %cst = arith.constant dense<0.000000e+00> : vector<8x32xf32>
    %5 = tpu.matmul %1, %2, %cst {dimension_numbers = #tpu.dot_dimension_numbers<[1], [0], [0], [1], [0, 0, 1, 1], [], []>} : vector<8x32xf32>, vector<32x32xf32>, vector<8x32xf32> -> vector<8x32xf32>
    %cst_9 = arith.constant dense<0.000000e+00> : vector<8x32xf32>
    %6 = tpu.matmul %0, %3, %cst_9 {dimension_numbers = #tpu.dot_dimension_numbers<[1], [0], [0], [1], [0, 0, 1, 1], [], []>} : vector<8x32xf32>, vector<32x32xf32>, vector<8x32xf32> -> vector<8x32xf32>
    %7 = arith.addf %5, %6 : vector<8x32xf32>
    %8 = vector.broadcast %4 : vector<1x32xf32> to vector<8x32xf32>
    %9 = arith.addf %7, %8 : vector<8x32xf32>
    %cst_10 = arith.constant dense<0.000000e+00> : vector<8xf32>
    %10 = vector.multi_reduction <add>, %9, %cst_10 [1] : vector<8x32xf32> to vector<8xf32>
    %11 = vector.shape_cast %10 : vector<8xf32> to vector<8x1xf32>
    %cst_11 = arith.constant 3.200000e+01 : f32
    %12 = vector.broadcast %cst_11 : f32 to vector<8x1xf32>
    %13 = arith.divf %11, %12 : vector<8x1xf32>
    %14 = vector.broadcast %13 : vector<8x1xf32> to vector<8x32xf32>
    %15 = arith.subf %9, %14 : vector<8x32xf32>
    %16 = arith.mulf %15, %15 : vector<8x32xf32>
    %cst_12 = arith.constant dense<0.000000e+00> : vector<8xf32>
    %17 = vector.multi_reduction <add>, %16, %cst_12 [1] : vector<8x32xf32> to vector<8xf32>
    %18 = vector.shape_cast %17 : vector<8xf32> to vector<8x1xf32>
    %cst_13 = arith.constant 3.200000e+01 : f32
    %19 = vector.broadcast %cst_13 : f32 to vector<8x1xf32>
    %20 = arith.divf %18, %19 : vector<8x1xf32>
    %21 = vector.broadcast %13 : vector<8x1xf32> to vector<8x32xf32>
    %22 = arith.subf %9, %21 : vector<8x32xf32>
    %cst_14 = arith.constant 9.99999974E-6 : f32
    %23 = vector.broadcast %cst_14 : f32 to vector<8x1xf32>
    %24 = arith.addf %20, %23 : vector<8x1xf32>
    %25 = math.rsqrt %24 : vector<8x1xf32>
    %26 = vector.broadcast %25 : vector<8x1xf32> to vector<8x32xf32>
    %27 = arith.mulf %22, %26 : vector<8x32xf32>
    %c0_15 = arith.constant 0 : index
    %c0_16 = arith.constant 0 : index
    %28 = vector.load %arg9[%c0_15, %c0_16] : memref<1x32xf32, #tpu.memory_space<vmem>>, vector<1x32xf32>
    %29 = vector.broadcast %28 : vector<1x32xf32> to vector<8x32xf32>
    %30 = arith.mulf %27, %29 : vector<8x32xf32>
    %c0_17 = arith.constant 0 : index
    %c0_18 = arith.constant 0 : index
    %31 = vector.load %arg10[%c0_17, %c0_18] : memref<1x32xf32, #tpu.memory_space<vmem>>, vector<1x32xf32>
    %32 = vector.broadcast %31 : vector<1x32xf32> to vector<8x32xf32>
    %33 = arith.addf %30, %32 : vector<8x32xf32>
    %cst_19 = arith.constant 0.000000e+00 : f32
    %34 = vector.broadcast %cst_19 : f32 to vector<8x32xf32>
    %35 = arith.maximumf %33, %34 : vector<8x32xf32>
    %c0_20 = arith.constant 0 : index
    %c0_21 = arith.constant 0 : index
    %36 = vector.load %arg11[%c0_20, %c0_21] : memref<32x32xf32, #tpu.memory_space<vmem>>, vector<32x32xf32>
    %cst_22 = arith.constant dense<0.000000e+00> : vector<8x32xf32>
    %37 = tpu.matmul %35, %36, %cst_22 {dimension_numbers = #tpu.dot_dimension_numbers<[1], [0], [0], [1], [0, 0, 1, 1], [], []>} : vector<8x32xf32>, vector<32x32xf32>, vector<8x32xf32> -> vector<8x32xf32>
    %c0_23 = arith.constant 0 : index
    %c0_24 = arith.constant 0 : index
    %38 = vector.load %arg12[%c0_23, %c0_24] : memref<1x32xf32, #tpu.memory_space<vmem>>, vector<1x32xf32>
    %39 = vector.broadcast %38 : vector<1x32xf32> to vector<8x32xf32>
    %40 = arith.addf %37, %39 : vector<8x32xf32>
    %c0_25 = arith.constant 0 : index
    %c0_26 = arith.constant 0 : index
    %41 = vector.load %arg1[%c0_25, %c0_26] : memref<8x32xf32, #tpu.memory_space<vmem>>, vector<8x32xf32>
    %c0_27 = arith.constant 0 : index
    %c0_28 = arith.constant 0 : index
    %42 = vector.load %arg13[%c0_27, %c0_28] : memref<32x32xf32, #tpu.memory_space<vmem>>, vector<32x32xf32>
    %c0_29 = arith.constant 0 : index
    %c0_30 = arith.constant 0 : index
    %43 = vector.load %arg14[%c0_29, %c0_30] : memref<32x32xf32, #tpu.memory_space<vmem>>, vector<32x32xf32>
    %c0_31 = arith.constant 0 : index
    %c0_32 = arith.constant 0 : index
    %44 = vector.load %arg15[%c0_31, %c0_32] : memref<1x32xf32, #tpu.memory_space<vmem>>, vector<1x32xf32>
    %cst_33 = arith.constant dense<0.000000e+00> : vector<8x32xf32>
    %45 = tpu.matmul %41, %42, %cst_33 {dimension_numbers = #tpu.dot_dimension_numbers<[1], [0], [0], [1], [0, 0, 1, 1], [], []>} : vector<8x32xf32>, vector<32x32xf32>, vector<8x32xf32> -> vector<8x32xf32>
    %cst_34 = arith.constant dense<0.000000e+00> : vector<8x32xf32>
    %46 = tpu.matmul %0, %43, %cst_34 {dimension_numbers = #tpu.dot_dimension_numbers<[1], [0], [0], [1], [0, 0, 1, 1], [], []>} : vector<8x32xf32>, vector<32x32xf32>, vector<8x32xf32> -> vector<8x32xf32>
    %47 = arith.addf %45, %46 : vector<8x32xf32>
    %48 = vector.broadcast %44 : vector<1x32xf32> to vector<8x32xf32>
    %49 = arith.addf %47, %48 : vector<8x32xf32>
    %cst_35 = arith.constant dense<0.000000e+00> : vector<8xf32>
    %50 = vector.multi_reduction <add>, %49, %cst_35 [1] : vector<8x32xf32> to vector<8xf32>
    %51 = vector.shape_cast %50 : vector<8xf32> to vector<8x1xf32>
    %cst_36 = arith.constant 3.200000e+01 : f32
    %52 = vector.broadcast %cst_36 : f32 to vector<8x1xf32>
    %53 = arith.divf %51, %52 : vector<8x1xf32>
    %54 = vector.broadcast %53 : vector<8x1xf32> to vector<8x32xf32>
    %55 = arith.subf %49, %54 : vector<8x32xf32>
    %56 = arith.mulf %55, %55 : vector<8x32xf32>
    %cst_37 = arith.constant dense<0.000000e+00> : vector<8xf32>
    %57 = vector.multi_reduction <add>, %56, %cst_37 [1] : vector<8x32xf32> to vector<8xf32>
    %58 = vector.shape_cast %57 : vector<8xf32> to vector<8x1xf32>
    %cst_38 = arith.constant 3.200000e+01 : f32
    %59 = vector.broadcast %cst_38 : f32 to vector<8x1xf32>
    %60 = arith.divf %58, %59 : vector<8x1xf32>
    %61 = vector.broadcast %53 : vector<8x1xf32> to vector<8x32xf32>
    %62 = arith.subf %49, %61 : vector<8x32xf32>
    %cst_39 = arith.constant 9.99999974E-6 : f32
    %63 = vector.broadcast %cst_39 : f32 to vector<8x1xf32>
    %64 = arith.addf %60, %63 : vector<8x1xf32>
    %65 = math.rsqrt %64 : vector<8x1xf32>
    %66 = vector.broadcast %65 : vector<8x1xf32> to vector<8x32xf32>
    %67 = arith.mulf %62, %66 : vector<8x32xf32>
    %c0_40 = arith.constant 0 : index
    %c0_41 = arith.constant 0 : index
    %68 = vector.load %arg16[%c0_40, %c0_41] : memref<1x32xf32, #tpu.memory_space<vmem>>, vector<1x32xf32>
    %69 = vector.broadcast %68 : vector<1x32xf32> to vector<8x32xf32>
    %70 = arith.mulf %67, %69 : vector<8x32xf32>
    %c0_42 = arith.constant 0 : index
    %c0_43 = arith.constant 0 : index
    %71 = vector.load %arg17[%c0_42, %c0_43] : memref<1x32xf32, #tpu.memory_space<vmem>>, vector<1x32xf32>
    %72 = vector.broadcast %71 : vector<1x32xf32> to vector<8x32xf32>
    %73 = arith.addf %70, %72 : vector<8x32xf32>
    %cst_44 = arith.constant 0.000000e+00 : f32
    %74 = vector.broadcast %cst_44 : f32 to vector<8x32xf32>
    %75 = arith.maximumf %73, %74 : vector<8x32xf32>
    %c0_45 = arith.constant 0 : index
    %c0_46 = arith.constant 0 : index
    %76 = vector.load %arg18[%c0_45, %c0_46] : memref<32x32xf32, #tpu.memory_space<vmem>>, vector<32x32xf32>
    %cst_47 = arith.constant dense<0.000000e+00> : vector<8x32xf32>
    %77 = tpu.matmul %75, %76, %cst_47 {dimension_numbers = #tpu.dot_dimension_numbers<[1], [0], [0], [1], [0, 0, 1, 1], [], []>} : vector<8x32xf32>, vector<32x32xf32>, vector<8x32xf32> -> vector<8x32xf32>
    %c0_48 = arith.constant 0 : index
    %c0_49 = arith.constant 0 : index
    %78 = vector.load %arg19[%c0_48, %c0_49] : memref<1x32xf32, #tpu.memory_space<vmem>>, vector<1x32xf32>
    %79 = vector.broadcast %78 : vector<1x32xf32> to vector<8x32xf32>
    %80 = arith.addf %77, %79 : vector<8x32xf32>
    %c0_50 = arith.constant 0 : index
    %c0_51 = arith.constant 0 : index
    %81 = vector.load %arg2[%c0_50, %c0_51] : memref<8x32xf32, #tpu.memory_space<vmem>>, vector<8x32xf32>
    %c0_52 = arith.constant 0 : index
    %c0_53 = arith.constant 0 : index
    %82 = vector.load %arg20[%c0_52, %c0_53] : memref<32x32xf32, #tpu.memory_space<vmem>>, vector<32x32xf32>
    %c0_54 = arith.constant 0 : index
    %c0_55 = arith.constant 0 : index
    %83 = vector.load %arg21[%c0_54, %c0_55] : memref<32x32xf32, #tpu.memory_space<vmem>>, vector<32x32xf32>
    %c0_56 = arith.constant 0 : index
    %c0_57 = arith.constant 0 : index
    %84 = vector.load %arg22[%c0_56, %c0_57] : memref<1x32xf32, #tpu.memory_space<vmem>>, vector<1x32xf32>
    %cst_58 = arith.constant dense<0.000000e+00> : vector<8x32xf32>
    %85 = tpu.matmul %81, %82, %cst_58 {dimension_numbers = #tpu.dot_dimension_numbers<[1], [0], [0], [1], [0, 0, 1, 1], [], []>} : vector<8x32xf32>, vector<32x32xf32>, vector<8x32xf32> -> vector<8x32xf32>
    %cst_59 = arith.constant dense<0.000000e+00> : vector<8x32xf32>
    %86 = tpu.matmul %0, %83, %cst_59 {dimension_numbers = #tpu.dot_dimension_numbers<[1], [0], [0], [1], [0, 0, 1, 1], [], []>} : vector<8x32xf32>, vector<32x32xf32>, vector<8x32xf32> -> vector<8x32xf32>
    %87 = arith.addf %85, %86 : vector<8x32xf32>
    %88 = vector.broadcast %84 : vector<1x32xf32> to vector<8x32xf32>
    %89 = arith.addf %87, %88 : vector<8x32xf32>
    %cst_60 = arith.constant dense<0.000000e+00> : vector<8xf32>
    %90 = vector.multi_reduction <add>, %89, %cst_60 [1] : vector<8x32xf32> to vector<8xf32>
    %91 = vector.shape_cast %90 : vector<8xf32> to vector<8x1xf32>
    %cst_61 = arith.constant 3.200000e+01 : f32
    %92 = vector.broadcast %cst_61 : f32 to vector<8x1xf32>
    %93 = arith.divf %91, %92 : vector<8x1xf32>
    %94 = vector.broadcast %93 : vector<8x1xf32> to vector<8x32xf32>
    %95 = arith.subf %89, %94 : vector<8x32xf32>
    %96 = arith.mulf %95, %95 : vector<8x32xf32>
    %cst_62 = arith.constant dense<0.000000e+00> : vector<8xf32>
    %97 = vector.multi_reduction <add>, %96, %cst_62 [1] : vector<8x32xf32> to vector<8xf32>
    %98 = vector.shape_cast %97 : vector<8xf32> to vector<8x1xf32>
    %cst_63 = arith.constant 3.200000e+01 : f32
    %99 = vector.broadcast %cst_63 : f32 to vector<8x1xf32>
    %100 = arith.divf %98, %99 : vector<8x1xf32>
    %101 = vector.broadcast %93 : vector<8x1xf32> to vector<8x32xf32>
    %102 = arith.subf %89, %101 : vector<8x32xf32>
    %cst_64 = arith.constant 9.99999974E-6 : f32
    %103 = vector.broadcast %cst_64 : f32 to vector<8x1xf32>
    %104 = arith.addf %100, %103 : vector<8x1xf32>
    %105 = math.rsqrt %104 : vector<8x1xf32>
    %106 = vector.broadcast %105 : vector<8x1xf32> to vector<8x32xf32>
    %107 = arith.mulf %102, %106 : vector<8x32xf32>
    %c0_65 = arith.constant 0 : index
    %c0_66 = arith.constant 0 : index
    %108 = vector.load %arg23[%c0_65, %c0_66] : memref<1x32xf32, #tpu.memory_space<vmem>>, vector<1x32xf32>
    %109 = vector.broadcast %108 : vector<1x32xf32> to vector<8x32xf32>
    %110 = arith.mulf %107, %109 : vector<8x32xf32>
    %c0_67 = arith.constant 0 : index
    %c0_68 = arith.constant 0 : index
    %111 = vector.load %arg24[%c0_67, %c0_68] : memref<1x32xf32, #tpu.memory_space<vmem>>, vector<1x32xf32>
    %112 = vector.broadcast %111 : vector<1x32xf32> to vector<8x32xf32>
    %113 = arith.addf %110, %112 : vector<8x32xf32>
    %cst_69 = arith.constant 0.000000e+00 : f32
    %114 = vector.broadcast %cst_69 : f32 to vector<8x32xf32>
    %115 = arith.maximumf %113, %114 : vector<8x32xf32>
    %c0_70 = arith.constant 0 : index
    %c0_71 = arith.constant 0 : index
    %116 = vector.load %arg25[%c0_70, %c0_71] : memref<32x32xf32, #tpu.memory_space<vmem>>, vector<32x32xf32>
    %cst_72 = arith.constant dense<0.000000e+00> : vector<8x32xf32>
    %117 = tpu.matmul %115, %116, %cst_72 {dimension_numbers = #tpu.dot_dimension_numbers<[1], [0], [0], [1], [0, 0, 1, 1], [], []>} : vector<8x32xf32>, vector<32x32xf32>, vector<8x32xf32> -> vector<8x32xf32>
    %c0_73 = arith.constant 0 : index
    %c0_74 = arith.constant 0 : index
    %118 = vector.load %arg26[%c0_73, %c0_74] : memref<1x32xf32, #tpu.memory_space<vmem>>, vector<1x32xf32>
    %119 = vector.broadcast %118 : vector<1x32xf32> to vector<8x32xf32>
    %120 = arith.addf %117, %119 : vector<8x32xf32>
    %c0_75 = arith.constant 0 : index
    %c0_76 = arith.constant 0 : index
    %121 = vector.load %arg4[%c0_75, %c0_76] : memref<8x32xf32, #tpu.memory_space<vmem>>, vector<8x32xf32>
    %c0_77 = arith.constant 0 : index
    %c0_78 = arith.constant 0 : index
    %122 = vector.load %arg5[%c0_77, %c0_78] : memref<8x32xf32, #tpu.memory_space<vmem>>, vector<8x32xf32>
    %c0_79 = arith.constant 0 : index
    %c0_80 = arith.constant 0 : index
    %123 = vector.load %arg27[%c0_79, %c0_80] : memref<32x32xf32, #tpu.memory_space<vmem>>, vector<32x32xf32>
    %c0_81 = arith.constant 0 : index
    %c0_82 = arith.constant 0 : index
    %124 = vector.load %arg28[%c0_81, %c0_82] : memref<32x32xf32, #tpu.memory_space<vmem>>, vector<32x32xf32>
    %c0_83 = arith.constant 0 : index
    %c0_84 = arith.constant 0 : index
    %125 = vector.load %arg29[%c0_83, %c0_84] : memref<1x32xf32, #tpu.memory_space<vmem>>, vector<1x32xf32>
    %cst_85 = arith.constant dense<0.000000e+00> : vector<8x32xf32>
    %126 = tpu.matmul %121, %123, %cst_85 {dimension_numbers = #tpu.dot_dimension_numbers<[1], [0], [0], [1], [0, 0, 1, 1], [], []>} : vector<8x32xf32>, vector<32x32xf32>, vector<8x32xf32> -> vector<8x32xf32>
    %cst_86 = arith.constant dense<0.000000e+00> : vector<8x32xf32>
    %127 = tpu.matmul %122, %124, %cst_86 {dimension_numbers = #tpu.dot_dimension_numbers<[1], [0], [0], [1], [0, 0, 1, 1], [], []>} : vector<8x32xf32>, vector<32x32xf32>, vector<8x32xf32> -> vector<8x32xf32>
    %128 = arith.addf %126, %127 : vector<8x32xf32>
    %129 = vector.broadcast %125 : vector<1x32xf32> to vector<8x32xf32>
    %130 = arith.addf %128, %129 : vector<8x32xf32>
    %cst_87 = arith.constant 0.000000e+00 : f32
    %131 = vector.broadcast %cst_87 : f32 to vector<8x32xf32>
    %132 = arith.maximumf %130, %131 : vector<8x32xf32>
    %c0_88 = arith.constant 0 : index
    %c0_89 = arith.constant 0 : index
    %133 = vector.load %arg30[%c0_88, %c0_89] : memref<32x32xf32, #tpu.memory_space<vmem>>, vector<32x32xf32>
    %cst_90 = arith.constant dense<0.000000e+00> : vector<8x32xf32>
    %134 = tpu.matmul %132, %133, %cst_90 {dimension_numbers = #tpu.dot_dimension_numbers<[1], [0], [0], [1], [0, 0, 1, 1], [], []>} : vector<8x32xf32>, vector<32x32xf32>, vector<8x32xf32> -> vector<8x32xf32>
    %c0_91 = arith.constant 0 : index
    %c0_92 = arith.constant 0 : index
    %135 = vector.load %arg31[%c0_91, %c0_92] : memref<1x32xf32, #tpu.memory_space<vmem>>, vector<1x32xf32>
    %136 = vector.broadcast %135 : vector<1x32xf32> to vector<8x32xf32>
    %137 = arith.addf %134, %136 : vector<8x32xf32>
    %c0_93 = arith.constant 0 : index
    %c0_94 = arith.constant 0 : index
    %138 = vector.load %arg27[%c0_93, %c0_94] : memref<32x32xf32, #tpu.memory_space<vmem>>, vector<32x32xf32>
    %c0_95 = arith.constant 0 : index
    %c0_96 = arith.constant 0 : index
    %139 = vector.load %arg28[%c0_95, %c0_96] : memref<32x32xf32, #tpu.memory_space<vmem>>, vector<32x32xf32>
    %c0_97 = arith.constant 0 : index
    %c0_98 = arith.constant 0 : index
    %140 = vector.load %arg29[%c0_97, %c0_98] : memref<1x32xf32, #tpu.memory_space<vmem>>, vector<1x32xf32>
    %cst_99 = arith.constant dense<0.000000e+00> : vector<8x32xf32>
    %141 = tpu.matmul %40, %138, %cst_99 {dimension_numbers = #tpu.dot_dimension_numbers<[1], [0], [0], [1], [0, 0, 1, 1], [], []>} : vector<8x32xf32>, vector<32x32xf32>, vector<8x32xf32> -> vector<8x32xf32>
    %cst_100 = arith.constant dense<0.000000e+00> : vector<8x32xf32>
    %142 = tpu.matmul %80, %139, %cst_100 {dimension_numbers = #tpu.dot_dimension_numbers<[1], [0], [0], [1], [0, 0, 1, 1], [], []>} : vector<8x32xf32>, vector<32x32xf32>, vector<8x32xf32> -> vector<8x32xf32>
    %143 = arith.addf %141, %142 : vector<8x32xf32>
    %144 = vector.broadcast %140 : vector<1x32xf32> to vector<8x32xf32>
    %145 = arith.addf %143, %144 : vector<8x32xf32>
    %cst_101 = arith.constant 0.000000e+00 : f32
    %146 = vector.broadcast %cst_101 : f32 to vector<8x32xf32>
    %147 = arith.maximumf %145, %146 : vector<8x32xf32>
    %c0_102 = arith.constant 0 : index
    %c0_103 = arith.constant 0 : index
    %148 = vector.load %arg30[%c0_102, %c0_103] : memref<32x32xf32, #tpu.memory_space<vmem>>, vector<32x32xf32>
    %cst_104 = arith.constant dense<0.000000e+00> : vector<8x32xf32>
    %149 = tpu.matmul %147, %148, %cst_104 {dimension_numbers = #tpu.dot_dimension_numbers<[1], [0], [0], [1], [0, 0, 1, 1], [], []>} : vector<8x32xf32>, vector<32x32xf32>, vector<8x32xf32> -> vector<8x32xf32>
    %c0_105 = arith.constant 0 : index
    %c0_106 = arith.constant 0 : index
    %150 = vector.load %arg31[%c0_105, %c0_106] : memref<1x32xf32, #tpu.memory_space<vmem>>, vector<1x32xf32>
    %151 = vector.broadcast %150 : vector<1x32xf32> to vector<8x32xf32>
    %152 = arith.addf %149, %151 : vector<8x32xf32>
    %c0_107 = arith.constant 0 : index
    %c0_108 = arith.constant 0 : index
    %153 = vector.load %arg32[%c0_107, %c0_108] : memref<32x32xf32, #tpu.memory_space<vmem>>, vector<32x32xf32>
    %c0_109 = arith.constant 0 : index
    %c0_110 = arith.constant 0 : index
    %154 = vector.load %arg33[%c0_109, %c0_110] : memref<32x32xf32, #tpu.memory_space<vmem>>, vector<32x32xf32>
    %c0_111 = arith.constant 0 : index
    %c0_112 = arith.constant 0 : index
    %155 = vector.load %arg34[%c0_111, %c0_112] : memref<1x32xf32, #tpu.memory_space<vmem>>, vector<1x32xf32>
    %cst_113 = arith.constant dense<0.000000e+00> : vector<8x32xf32>
    %156 = tpu.matmul %137, %153, %cst_113 {dimension_numbers = #tpu.dot_dimension_numbers<[1], [0], [0], [1], [0, 0, 1, 1], [], []>} : vector<8x32xf32>, vector<32x32xf32>, vector<8x32xf32> -> vector<8x32xf32>
    %cst_114 = arith.constant dense<0.000000e+00> : vector<8x32xf32>
    %157 = tpu.matmul %152, %154, %cst_114 {dimension_numbers = #tpu.dot_dimension_numbers<[1], [0], [0], [1], [0, 0, 1, 1], [], []>} : vector<8x32xf32>, vector<32x32xf32>, vector<8x32xf32> -> vector<8x32xf32>
    %158 = arith.addf %156, %157 : vector<8x32xf32>
    %159 = vector.broadcast %155 : vector<1x32xf32> to vector<8x32xf32>
    %160 = arith.addf %158, %159 : vector<8x32xf32>
    %cst_115 = arith.constant 0.000000e+00 : f32
    %161 = vector.broadcast %cst_115 : f32 to vector<8x32xf32>
    %162 = arith.maximumf %160, %161 : vector<8x32xf32>
    %c0_116 = arith.constant 0 : index
    %c0_117 = arith.constant 0 : index
    %163 = vector.load %arg35[%c0_116, %c0_117] : memref<32x1xf32, #tpu.memory_space<vmem>>, vector<32x1xf32>
    %cst_118 = arith.constant dense<0.000000e+00> : vector<8x1xf32>
    %164 = tpu.matmul %162, %163, %cst_118 {dimension_numbers = #tpu.dot_dimension_numbers<[1], [0], [0], [1], [0, 0, 1, 1], [], []>} : vector<8x32xf32>, vector<32x1xf32>, vector<8x1xf32> -> vector<8x1xf32>
    %c0_119 = arith.constant 0 : index
    %c0_120 = arith.constant 0 : index
    %165 = vector.load %arg36[%c0_119, %c0_120] : memref<1x1xf32, #tpu.memory_space<vmem>>, vector<1x1xf32>
    %166 = vector.broadcast %165 : vector<1x1xf32> to vector<8x1xf32>
    %167 = arith.addf %164, %166 : vector<8x1xf32>
    %168 = arith.negf %167 : vector<8x1xf32>
    %169 = math.exp %168 : vector<8x1xf32>
    %cst_121 = arith.constant 1.000000e+00 : f32
    %170 = vector.broadcast %cst_121 : f32 to vector<8x1xf32>
    %171 = arith.addf %170, %169 : vector<8x1xf32>
    %172 = arith.divf %170, %171 : vector<8x1xf32>
    %173 = vector.shape_cast %172 : vector<8x1xf32> to vector<8x1xf32>
    %174 = vector.broadcast %173 : vector<8x1xf32> to vector<8x32xf32>
    %175 = tpu.concatenate %40, %80, %120, %174 in 1 : vector<8x32xf32>, vector<8x32xf32>, vector<8x32xf32>, vector<8x32xf32> -> vector<8x128xf32>
    %c0_122 = arith.constant 0 : index
    %c0_123 = arith.constant 0 : index
    %176 = vector.load %arg37[%c0_122, %c0_123] : memref<8x128xf32, #tpu.memory_space<vmem>>, vector<8x128xf32>
    tpu.vector_store %arg37[%c0_122, %c0_123], %175 {strides = array<i32>} : memref<8x128xf32, #tpu.memory_space<vmem>>, vector<8x128xf32>,
    return
  }
}

</mosaic_0001>

<llo_original>
// kernel: tpu_custom_call.1
$region0: #{tpu_custom_call.1}
  #allocation0 [shape = 'u32[]', space=smem, size = 0x4, offset = 0x4, fixed_abs, tag = 'smem constant byte address 0x4 - core index']
  #allocation1 [shape = 'u32[72,128]{1,0:T(1,128)}', space=vmem, size = 0x9000, scoped, tag = 'internal scratch']
  #allocation2 [shape = 'f32[1,1]{1,0:T(1,128)S(1)}', space=vmem, size = 0x200, scoped, tag = 'scoped memory for tpu_custom_call.1']
  %s0 = inlined_call_operand.smem [shape: u32[38], index: -1, kind: input, shape index: {}]
  %s1 = sld [smem:[%s0]]
  %s2 = scalar_lea.smem %s0, 1
  %s3 = sld [smem:[%s2]]
  %s4 = scalar_lea.smem %s0, 2
  %s5 = sld [smem:[%s4]]
  %s6 = scalar_lea.smem %s0, 3
  %s7 = sld [smem:[%s6]]
  %s8 = scalar_lea.smem %s0, 4
  %s9 = sld [smem:[%s8]]
  %s10 = scalar_lea.smem %s0, 5
  %s11 = sld [smem:[%s10]]
  %s12 = scalar_lea.smem %s0, 6
  %s13 = sld [smem:[%s12]]
  %s14 = scalar_lea.smem %s0, 7
  %s15 = sld [smem:[%s14]]
  %s16 = scalar_lea.smem %s0, 8
  %s17 = sld [smem:[%s16]]
  %s18 = scalar_lea.smem %s0, 9
  %s19 = sld [smem:[%s18]]
  %s20 = scalar_lea.smem %s0, 10
  %s21 = sld [smem:[%s20]]
  %s22 = scalar_lea.smem %s0, 11
  %s23 = sld [smem:[%s22]]
  %s24 = scalar_lea.smem %s0, 12
  %s25 = sld [smem:[%s24]]
  %s26 = scalar_lea.smem %s0, 13
  %s27 = sld [smem:[%s26]]
  %s28 = scalar_lea.smem %s0, 14
  %s29 = sld [smem:[%s28]]
  %s30 = scalar_lea.smem %s0, 15
  %s31 = sld [smem:[%s30]]
  %s32 = scalar_lea.smem %s0, 16
  %s33 = sld [smem:[%s32]]
  %s34 = scalar_lea.smem %s0, 17
  %s35 = sld [smem:[%s34]]
  %s36 = scalar_lea.smem %s0, 18
  %s37 = sld [smem:[%s36]]
  %s38 = scalar_lea.smem %s0, 19
  %s39 = sld [smem:[%s38]]
  %s40 = scalar_lea.smem %s0, 20
  %s41 = sld [smem:[%s40]]
  %s42 = scalar_lea.smem %s0, 21
  %s43 = sld [smem:[%s42]]
  %s44 = scalar_lea.smem %s0, 22
  %s45 = sld [smem:[%s44]]
  %s46 = scalar_lea.smem %s0, 23
  %s47 = sld [smem:[%s46]]
  %s48 = scalar_lea.smem %s0, 24
  %s49 = sld [smem:[%s48]]
  %s50 = scalar_lea.smem %s0, 25
  %s51 = sld [smem:[%s50]]
  %s52 = scalar_lea.smem %s0, 26
  %s53 = sld [smem:[%s52]]
  %s54 = scalar_lea.smem %s0, 27
  %s55 = sld [smem:[%s54]]
  %s56 = scalar_lea.smem %s0, 28
  %s57 = sld [smem:[%s56]]
  %s58 = scalar_lea.smem %s0, 29
  %s59 = sld [smem:[%s58]]
  %s60 = scalar_lea.smem %s0, 30
  %s61 = sld [smem:[%s60]]
  %s62 = scalar_lea.smem %s0, 31
  %s63 = sld [smem:[%s62]]
  %s64 = scalar_lea.smem %s0, 32
  %s65 = sld [smem:[%s64]]
  %s66 = scalar_lea.smem %s0, 33
  %s67 = sld [smem:[%s66]]
  %s68 = scalar_lea.smem %s0, 34
  %s69 = sld [smem:[%s68]]
  %s70 = scalar_lea.smem %s0, 35
  %s71 = sld [smem:[%s70]]
  %s72 = scalar_lea.smem %s0, 36
  %s73 = sld [smem:[%s72]]
  %s74 = scalar_lea.smem %s0, 37
  %s75 = sld [smem:[%s74]]
  %s76 = sld [smem:[#allocation0]]
  $region282: #{tpu_custom_call.1} parent=0
    _
  %s78 = ssub.s32 1, %s76
  %s79 = scalar_select 0, %s78, %s76
  %v80 = vstv %s73
  %81 = vst [vmem:[#allocation2] sm:$0x1] %v80
  $region1: #{tpu_custom_call.1} parent=0
    #allocation3 [shape = 'u8[4096]{0}', space=vmem, size = 0x1000, scoped, tag = 'input window, operand 0, single buffered']
    #allocation4 [shape = 's32[1]{0}', space=sflag, size = 0x4, scoped, tag = 'scoped memory for tpu_custom_call.1']
    #allocation5 [shape = 's32[1]{0}', space=sflag, size = 0x4, scoped, tag = 'scoped memory for tpu_custom_call.1']
    #allocation6 [shape = 'u8[4096]{0}', space=vmem, size = 0x1000, scoped, tag = 'input window, operand 1, single buffered']
    #allocation7 [shape = 's32[1]{0}', space=sflag, size = 0x4, scoped, tag = 'scoped memory for tpu_custom_call.1']
    #allocation8 [shape = 'u8[4096]{0}', space=vmem, size = 0x1000, scoped, tag = 'input window, operand 2, single buffered']
    #allocation9 [shape = 'u8[4096]{0}', space=vmem, size = 0x1000, scoped, tag = 'input window, operand 3, single buffered']
    #allocation10 [shape = 's32[1]{0}', space=sflag, size = 0x4, scoped, tag = 'scoped memory for tpu_custom_call.1']
    #allocation11 [shape = 'u8[4096]{0}', space=vmem, size = 0x1000, scoped, tag = 'input window, operand 4, single buffered']
    #allocation12 [shape = 'u8[4096]{0}', space=vmem, size = 0x1000, scoped, tag = 'input window, operand 5, single buffered']
    #allocation13 [shape = 's32[1]{0}', space=sflag, size = 0x4, scoped, tag = 'scoped memory for tpu_custom_call.1']
    #allocation14 [shape = 'u8[16384]{0}', space=vmem, size = 0x4000, scoped, tag = 'input window, operand 7, single buffered']
    #allocation15 [shape = 'u8[512]{0}', space=vmem, size = 0x400, scoped, tag = 'input window, operand 9, single buffered']
    #allocation16 [shape = 's32[1]{0}', space=sflag, size = 0x4, scoped, tag = 'scoped memory for tpu_custom_call.1']
    #allocation17 [shape = 'u8[512]{0}', space=vmem, size = 0x400, scoped, tag = 'input window, operand 10, single buffered']
    #allocation18 [shape = 'u8[16384]{0}', space=vmem, size = 0x4000, scoped, tag = 'input window, operand 11, single buffered']
    #allocation19 [shape = 's32[1]{0}', space=sflag, size = 0x4, scoped, tag = 'scoped memory for tpu_custom_call.1']
    #allocation20 [shape = 'u8[512]{0}', space=vmem, size = 0x400, scoped, tag = 'input window, operand 12, single buffered']
    #allocation21 [shape = 'u8[16384]{0}', space=vmem, size = 0x4000, scoped, tag = 'input window, operand 13, single buffered']
    #allocation22 [shape = 's32[1]{0}', space=sflag, size = 0x4, scoped, tag = 'scoped memory for tpu_custom_call.1']
    #allocation23 [shape = 'u8[16384]{0}', space=vmem, size = 0x4000, scoped, tag = 'input window, operand 14, single buffered']
    #allocation24 [shape = 'u8[512]{0}', space=vmem, size = 0x400, scoped, tag = 'input window, operand 15, single buffered']
    #allocation25 [shape = 's32[1]{0}', space=sflag, size = 0x4, scoped, tag = 'scoped memory for tpu_custom_call.1']
    #allocation26 [shape = 'u8[512]{0}', space=vmem, size = 0x400, scoped, tag = 'input window, operand 16, single buffered']
    #allocation27 [shape = 'u8[512]{0}', space=vmem, size = 0x400, scoped, tag = 'input window, operand 17, single buffered']
    #allocation28 [shape = 's32[1]{0}', space=sflag, size = 0x4, scoped, tag = 'scoped memory for tpu_custom_call.1']
    #allocation29 [shape = 'u8[16384]{0}', space=vmem, size = 0x4000, scoped, tag = 'input window, operand 18, single buffered']
    #allocation30 [shape = 'u8[512]{0}', space=vmem, size = 0x400, scoped, tag = 'input window, operand 19, single buffered']
    #allocation31 [shape = 's32[1]{0}', space=sflag, size = 0x4, scoped, tag = 'scoped memory for tpu_custom_call.1']
    #allocation32 [shape = 'u8[16384]{0}', space=vmem, size = 0x4000, scoped, tag = 'input window, operand 20, single buffered']
    #allocation33 [shape = 'u8[16384]{0}', space=vmem, size = 0x4000, scoped, tag = 'input window, operand 21, single buffered']
    #allocation34 [shape = 's32[1]{0}', space=sflag, size = 0x4, scoped, tag = 'scoped memory for tpu_custom_call.1']
    #allocation35 [shape = 'u8[512]{0}', space=vmem, size = 0x400, scoped, tag = 'input window, operand 22, single buffered']
    #allocation36 [shape = 'u8[512]{0}', space=vmem, size = 0x400, scoped, tag = 'input window, operand 23, single buffered']
    #allocation37 [shape = 's32[1]{0}', space=sflag, size = 0x4, scoped, tag = 'scoped memory for tpu_custom_call.1']
    #allocation38 [shape = 'u8[512]{0}', space=vmem, size = 0x400, scoped, tag = 'input window, operand 24, single buffered']
    #allocation39 [shape = 'u8[16384]{0}', space=vmem, size = 0x4000, scoped, tag = 'input window, operand 25, single buffered']
    #allocation40 [shape = 's32[1]{0}', space=sflag, size = 0x4, scoped, tag = 'scoped memory for tpu_custom_call.1']
    #allocation41 [shape = 'u8[512]{0}', space=vmem, size = 0x400, scoped, tag = 'input window, operand 26, single buffered']
    #allocation42 [shape = 'u8[16384]{0}', space=vmem, size = 0x4000, scoped, tag = 'input window, operand 27, single buffered']
    #allocation43 [shape = 's32[1]{0}', space=sflag, size = 0x4, scoped, tag = 'scoped memory for tpu_custom_call.1']
    #allocation44 [shape = 'u8[16384]{0}', space=vmem, size = 0x4000, scoped, tag = 'input window, operand 28, single buffered']
    #allocation45 [shape = 'u8[512]{0}', space=vmem, size = 0x400, scoped, tag = 'input window, operand 29, single buffered']
    #allocation46 [shape = 's32[1]{0}', space=sflag, size = 0x4, scoped, tag = 'scoped memory for tpu_custom_call.1']
    #allocation47 [shape = 'u8[16384]{0}', space=vmem, size = 0x4000, scoped, tag = 'input window, operand 30, single buffered']
    #allocation48 [shape = 'u8[512]{0}', space=vmem, size = 0x400, scoped, tag = 'input window, operand 31, single buffered']
    #allocation49 [shape = 's32[1]{0}', space=sflag, size = 0x4, scoped, tag = 'scoped memory for tpu_custom_call.1']
    #allocation50 [shape = 'u8[16384]{0}', space=vmem, size = 0x4000, scoped, tag = 'input window, operand 32, single buffered']
    #allocation51 [shape = 'u8[4096]{0}', space=vmem, size = 0x1000, scoped, tag = 'output window, operand 0, single buffered']
    %82 = vsyncpa [#allocation4], 0
    %83 = vsyncpa [#allocation7], 0
    %84 = vsyncpa [#allocation10], 0
    %85 = vsyncpa [#allocation13], 0
    %86 = vsyncpa [#allocation16], 0
    %87 = vsyncpa [#allocation19], 0
    %88 = vsyncpa [#allocation22], 0
    %89 = vsyncpa [#allocation25], 0
    %90 = vsyncpa [#allocation28], 0
    %91 = vsyncpa [#allocation31], 0
    %92 = vsyncpa [#allocation34], 0
    %93 = vsyncpa [#allocation37], 0
    %94 = vsyncpa [#allocation40], 0
    %95 = vsyncpa [#allocation43], 0
    %96 = vsyncpa [#allocation46], 0
    %97 = vsyncpa [#allocation49], 0
    %98 = vsyncpa [#allocation5], 0
    // Predicated region
    $region2: #{tpu_custom_call.1} parent=1 // pred_check
      _
    $region3: #{tpu_custom_call.1} parent=1 // pred_check_branch
      %100 = sbr.rel (0) target = $region5
    $region4: #{tpu_custom_call.1} parent=1 // pred_region
      %102 = vsyncadd [#allocation4], 0
      %s104 = sshll.u32 %s1, 4
      %s105 = int_to_ptr.hbm [resolvable:$true] %s104
      %s106 = sshll.u32 [#allocation3], 4
      %s107 = int_to_ptr.vmem [resolvable:$true] %s106
      %109 = dma.hbm_to_vmem [thread:$0]  %s105, 128, %s107, [#allocation4]
    $region5: #{tpu_custom_call.1} parent=1 // pred_fallthru
      _
    // Predicated region
    $region6: #{tpu_custom_call.1} parent=1 // pred_check
      _
    $region7: #{tpu_custom_call.1} parent=1 // pred_check_branch
      %111 = sbr.rel (0) target = $region9
    $region8: #{tpu_custom_call.1} parent=1 // pred_region
      %113 = vsyncadd [#allocation7], 0
      %s115 = sshll.u32 %s3, 4
      %s116 = int_to_ptr.hbm [resolvable:$true] %s115
      %s117 = sshll.u32 [#allocation6], 4
      %s118 = int_to_ptr.vmem [resolvable:$true] %s117
      %120 = dma.hbm_to_vmem [thread:$0]  %s116, 128, %s118, [#allocation7]
    $region9: #{tpu_custom_call.1} parent=1 // pred_fallthru
      _
    // Predicated region
    $region10: #{tpu_custom_call.1} parent=1 // pred_check
      _
    $region11: #{tpu_custom_call.1} parent=1 // pred_check_branch
      %122 = sbr.rel (0) target = $region13
    $region12: #{tpu_custom_call.1} parent=1 // pred_region
      %124 = vsyncadd [#allocation7], 0
      %s126 = sshll.u32 %s5, 4
      %s127 = int_to_ptr.hbm [resolvable:$true] %s126
      %s128 = sshll.u32 [#allocation8], 4
      %s129 = int_to_ptr.vmem [resolvable:$true] %s128
      %131 = dma.hbm_to_vmem [thread:$0]  %s127, 128, %s129, [#allocation7]
    $region13: #{tpu_custom_call.1} parent=1 // pred_fallthru
      _
    // Predicated region
    $region14: #{tpu_custom_call.1} parent=1 // pred_check
      _
    $region15: #{tpu_custom_call.1} parent=1 // pred_check_branch
      %133 = sbr.rel (0) target = $region17
    $region16: #{tpu_custom_call.1} parent=1 // pred_region
      %135 = vsyncadd [#allocation10], 0
      %s137 = sshll.u32 %s7, 4
      %s138 = int_to_ptr.hbm [resolvable:$true] %s137
      %s139 = sshll.u32 [#allocation9], 4
      %s140 = int_to_ptr.vmem [resolvable:$true] %s139
      %142 = dma.hbm_to_vmem [thread:$0]  %s138, 128, %s140, [#allocation10]
    $region17: #{tpu_custom_call.1} parent=1 // pred_fallthru
      _
    // Predicated region
    $region18: #{tpu_custom_call.1} parent=1 // pred_check
      _
    $region19: #{tpu_custom_call.1} parent=1 // pred_check_branch
      %144 = sbr.rel (0) target = $region21
    $region20: #{tpu_custom_call.1} parent=1 // pred_region
      %146 = vsyncadd [#allocation10], 0
      %s148 = sshll.u32 %s9, 4
      %s149 = int_to_ptr.hbm [resolvable:$true] %s148
      %s150 = sshll.u32 [#allocation11], 4
      %s151 = int_to_ptr.vmem [resolvable:$true] %s150
      %153 = dma.hbm_to_vmem [thread:$0]  %s149, 128, %s151, [#allocation10]
    $region21: #{tpu_custom_call.1} parent=1 // pred_fallthru
      _
    // Predicated region
    $region22: #{tpu_custom_call.1} parent=1 // pred_check
      _
    $region23: #{tpu_custom_call.1} parent=1 // pred_check_branch
      %155 = sbr.rel (0) target = $region25
    $region24: #{tpu_custom_call.1} parent=1 // pred_region
      %157 = vsyncadd [#allocation13], 0
      %s159 = sshll.u32 %s11, 4
      %s160 = int_to_ptr.hbm [resolvable:$true] %s159
      %s161 = sshll.u32 [#allocation12], 4
      %s162 = int_to_ptr.vmem [resolvable:$true] %s161
      %164 = dma.hbm_to_vmem [thread:$0]  %s160, 128, %s162, [#allocation13]
    $region25: #{tpu_custom_call.1} parent=1 // pred_fallthru
      _
    // Predicated region
    $region26: #{tpu_custom_call.1} parent=1 // pred_check
      _
    $region27: #{tpu_custom_call.1} parent=1 // pred_check_branch
      %166 = sbr.rel (0) target = $region29
    $region28: #{tpu_custom_call.1} parent=1 // pred_region
      _
    $region29: #{tpu_custom_call.1} parent=1 // pred_fallthru
      _
    // Predicated region
    $region30: #{tpu_custom_call.1} parent=1 // pred_check
      _
    $region31: #{tpu_custom_call.1} parent=1 // pred_check_branch
      %168 = sbr.rel (0) target = $region33
    $region32: #{tpu_custom_call.1} parent=1 // pred_region
      %170 = vsyncadd [#allocation13], 0
      %s171 = sshll.u32 %s15, 4
      %s172 = int_to_ptr.hbm [resolvable:$true] %s171
      %s173 = sshll.u32 [#allocation14], 4
      %s174 = int_to_ptr.vmem [resolvable:$true] %s173
      %179 = dma.hbm_to_vmem [thread:$0]  %s172, 512, %s174, [#allocation13], 128, 128, 8
    $region33: #{tpu_custom_call.1} parent=1 // pred_fallthru
      _
    // Predicated region
    $region34: #{tpu_custom_call.1} parent=1 // pred_check
      _
    $region35: #{tpu_custom_call.1} parent=1 // pred_check_branch
      %181 = sbr.rel (0) target = $region37
    $region36: #{tpu_custom_call.1} parent=1 // pred_region
      _
    $region37: #{tpu_custom_call.1} parent=1 // pred_fallthru
      _
    // Predicated region
    $region38: #{tpu_custom_call.1} parent=1 // pred_check
      _
    $region39: #{tpu_custom_call.1} parent=1 // pred_check_branch
      %183 = sbr.rel (0) target = $region41
    $region40: #{tpu_custom_call.1} parent=1 // pred_region
      %185 = vsyncadd [#allocation16], 0
      %s187 = sshll.u32 %s19, 4
      %s188 = int_to_ptr.hbm [resolvable:$true] %s187
      %s189 = sshll.u32 [#allocation15], 4
      %s190 = int_to_ptr.vmem [resolvable:$true] %s189
      %192 = dma.hbm_to_vmem [thread:$0]  %s188, 16, %s190, [#allocation16]
    $region41: #{tpu_custom_call.1} parent=1 // pred_fallthru
      _
    // Predicated region
    $region42: #{tpu_custom_call.1} parent=1 // pred_check
      _
    $region43: #{tpu_custom_call.1} parent=1 // pred_check_branch
      %194 = sbr.rel (0) target = $region45
    $region44: #{tpu_custom_call.1} parent=1 // pred_region
      %196 = vsyncadd [#allocation16], 0
      %s198 = sshll.u32 %s21, 4
      %s199 = int_to_ptr.hbm [resolvable:$true] %s198
      %s200 = sshll.u32 [#allocation17], 4
      %s201 = int_to_ptr.vmem [resolvable:$true] %s200
      %203 = dma.hbm_to_vmem [thread:$0]  %s199, 16, %s201, [#allocation16]
    $region45: #{tpu_custom_call.1} parent=1 // pred_fallthru
      _
    // Predicated region
    $region46: #{tpu_custom_call.1} parent=1 // pred_check
      _
    $region47: #{tpu_custom_call.1} parent=1 // pred_check_branch
      %205 = sbr.rel (0) target = $region49
    $region48: #{tpu_custom_call.1} parent=1 // pred_region
      %207 = vsyncadd [#allocation19], 0
      %s208 = sshll.u32 %s23, 4
      %s209 = int_to_ptr.hbm [resolvable:$true] %s208
      %s210 = sshll.u32 [#allocation18], 4
      %s211 = int_to_ptr.vmem [resolvable:$true] %s210
      %216 = dma.hbm_to_vmem [thread:$0]  %s209, 512, %s211, [#allocation19], 128, 128, 8
    $region49: #{tpu_custom_call.1} parent=1 // pred_fallthru
      _
    // Predicated region
    $region50: #{tpu_custom_call.1} parent=1 // pred_check
      _
    $region51: #{tpu_custom_call.1} parent=1 // pred_check_branch
      %218 = sbr.rel (0) target = $region53
    $region52: #{tpu_custom_call.1} parent=1 // pred_region
      %220 = vsyncadd [#allocation19], 0
      %s222 = sshll.u32 %s25, 4
      %s223 = int_to_ptr.hbm [resolvable:$true] %s222
      %s224 = sshll.u32 [#allocation20], 4
      %s225 = int_to_ptr.vmem [resolvable:$true] %s224
      %227 = dma.hbm_to_vmem [thread:$0]  %s223, 16, %s225, [#allocation19]
    $region53: #{tpu_custom_call.1} parent=1 // pred_fallthru
      _
    // Predicated region
    $region54: #{tpu_custom_call.1} parent=1 // pred_check
      _
    $region55: #{tpu_custom_call.1} parent=1 // pred_check_branch
      %229 = sbr.rel (0) target = $region57
    $region56: #{tpu_custom_call.1} parent=1 // pred_region
      %231 = vsyncadd [#allocation22], 0
      %s232 = sshll.u32 %s27, 4
      %s233 = int_to_ptr.hbm [resolvable:$true] %s232
      %s234 = sshll.u32 [#allocation21], 4
      %s235 = int_to_ptr.vmem [resolvable:$true] %s234
      %240 = dma.hbm_to_vmem [thread:$0]  %s233, 512, %s235, [#allocation22], 128, 128, 8
    $region57: #{tpu_custom_call.1} parent=1 // pred_fallthru
      _
    // Predicated region
    $region58: #{tpu_custom_call.1} parent=1 // pred_check
      _
    $region59: #{tpu_custom_call.1} parent=1 // pred_check_branch
      %242 = sbr.rel (0) target = $region61
    $region60: #{tpu_custom_call.1} parent=1 // pred_region
      %244 = vsyncadd [#allocation22], 0
      %s245 = sshll.u32 %s29, 4
      %s246 = int_to_ptr.hbm [resolvable:$true] %s245
      %s247 = sshll.u32 [#allocation23], 4
      %s248 = int_to_ptr.vmem [resolvable:$true] %s247
      %253 = dma.hbm_to_vmem [thread:$0]  %s246, 512, %s248, [#allocation22], 128, 128, 8
    $region61: #{tpu_custom_call.1} parent=1 // pred_fallthru
      _
    // Predicated region
    $region62: #{tpu_custom_call.1} parent=1 // pred_check
      _
    $region63: #{tpu_custom_call.1} parent=1 // pred_check_branch
      %255 = sbr.rel (0) target = $region65
    $region64: #{tpu_custom_call.1} parent=1 // pred_region
      %257 = vsyncadd [#allocation25], 0
      %s259 = sshll.u32 %s31, 4
      %s260 = int_to_ptr.hbm [resolvable:$true] %s259
      %s261 = sshll.u32 [#allocation24], 4
      %s262 = int_to_ptr.vmem [resolvable:$true] %s261
      %264 = dma.hbm_to_vmem [thread:$0]  %s260, 16, %s262, [#allocation25]
    $region65: #{tpu_custom_call.1} parent=1 // pred_fallthru
      _
    // Predicated region
    $region66: #{tpu_custom_call.1} parent=1 // pred_check
      _
    $region67: #{tpu_custom_call.1} parent=1 // pred_check_branch
      %266 = sbr.rel (0) target = $region69
    $region68: #{tpu_custom_call.1} parent=1 // pred_region
      %268 = vsyncadd [#allocation25], 0
      %s270 = sshll.u32 %s33, 4
      %s271 = int_to_ptr.hbm [resolvable:$true] %s270
      %s272 = sshll.u32 [#allocation26], 4
      %s273 = int_to_ptr.vmem [resolvable:$true] %s272
      %275 = dma.hbm_to_vmem [thread:$0]  %s271, 16, %s273, [#allocation25]
    $region69: #{tpu_custom_call.1} parent=1 // pred_fallthru
      _
    // Predicated region
    $region70: #{tpu_custom_call.1} parent=1 // pred_check
      _
    $region71: #{tpu_custom_call.1} parent=1 // pred_check_branch
      %277 = sbr.rel (0) target = $region73
    $region72: #{tpu_custom_call.1} parent=1 // pred_region
      %279 = vsyncadd [#allocation28], 0
      %s281 = sshll.u32 %s35, 4
      %s282 = int_to_ptr.hbm [resolvable:$true] %s281
      %s283 = sshll.u32 [#allocation27], 4
      %s284 = int_to_ptr.vmem [resolvable:$true] %s283
      %286 = dma.hbm_to_vmem [thread:$0]  %s282, 16, %s284, [#allocation28]
    $region73: #{tpu_custom_call.1} parent=1 // pred_fallthru
      _
    // Predicated region
    $region74: #{tpu_custom_call.1} parent=1 // pred_check
      _
    $region75: #{tpu_custom_call.1} parent=1 // pred_check_branch
      %288 = sbr.rel (0) target = $region77
    $region76: #{tpu_custom_call.1} parent=1 // pred_region
      %290 = vsyncadd [#allocation28], 0
      %s291 = sshll.u32 %s37, 4
      %s292 = int_to_ptr.hbm [resolvable:$true] %s291
      %s293 = sshll.u32 [#allocation29], 4
      %s294 = int_to_ptr.vmem [resolvable:$true] %s293
      %299 = dma.hbm_to_vmem [thread:$0]  %s292, 512, %s294, [#allocation28], 128, 128, 8
    $region77: #{tpu_custom_call.1} parent=1 // pred_fallthru
      _
    // Predicated region
    $region78: #{tpu_custom_call.1} parent=1 // pred_check
      _
    $region79: #{tpu_custom_call.1} parent=1 // pred_check_branch
      %301 = sbr.rel (0) target = $region81
    $region80: #{tpu_custom_call.1} parent=1 // pred_region
      %303 = vsyncadd [#allocation31], 0
      %s305 = sshll.u32 %s39, 4
      %s306 = int_to_ptr.hbm [resolvable:$true] %s305
      %s307 = sshll.u32 [#allocation30], 4
      %s308 = int_to_ptr.vmem [resolvable:$true] %s307
      %310 = dma.hbm_to_vmem [thread:$0]  %s306, 16, %s308, [#allocation31]
    $region81: #{tpu_custom_call.1} parent=1 // pred_fallthru
      _
    // Predicated region
    $region82: #{tpu_custom_call.1} parent=1 // pred_check
      _
    $region83: #{tpu_custom_call.1} parent=1 // pred_check_branch
      %312 = sbr.rel (0) target = $region85
    $region84: #{tpu_custom_call.1} parent=1 // pred_region
      %314 = vsyncadd [#allocation31], 0
      %s315 = sshll.u32 %s41, 4
      %s316 = int_to_ptr.hbm [resolvable:$true] %s315
      %s317 = sshll.u32 [#allocation32], 4
      %s318 = int_to_ptr.vmem [resolvable:$true] %s317
      %323 = dma.hbm_to_vmem [thread:$0]  %s316, 512, %s318, [#allocation31], 128, 128, 8
    $region85: #{tpu_custom_call.1} parent=1 // pred_fallthru
      _
    // Predicated region
    $region86: #{tpu_custom_call.1} parent=1 // pred_check
      _
    $region87: #{tpu_custom_call.1} parent=1 // pred_check_branch
      %325 = sbr.rel (0) target = $region89
    $region88: #{tpu_custom_call.1} parent=1 // pred_region
      %327 = vsyncadd [#allocation34], 0
      %s328 = sshll.u32 %s43, 4
      %s329 = int_to_ptr.hbm [resolvable:$true] %s328
      %s330 = sshll.u32 [#allocation33], 4
      %s331 = int_to_ptr.vmem [resolvable:$true] %s330
      %336 = dma.hbm_to_vmem [thread:$0]  %s329, 512, %s331, [#allocation34], 128, 128, 8
    $region89: #{tpu_custom_call.1} parent=1 // pred_fallthru
      _
    // Predicated region
    $region90: #{tpu_custom_call.1} parent=1 // pred_check
      _
    $region91: #{tpu_custom_call.1} parent=1 // pred_check_branch
      %338 = sbr.rel (0) target = $region93
    $region92: #{tpu_custom_call.1} parent=1 // pred_region
      %340 = vsyncadd [#allocation34], 0
      %s342 = sshll.u32 %s45, 4
      %s343 = int_to_ptr.hbm [resolvable:$true] %s342
      %s344 = sshll.u32 [#allocation35], 4
      %s345 = int_to_ptr.vmem [resolvable:$true] %s344
      %347 = dma.hbm_to_vmem [thread:$0]  %s343, 16, %s345, [#allocation34]
    $region93: #{tpu_custom_call.1} parent=1 // pred_fallthru
      _
    // Predicated region
    $region94: #{tpu_custom_call.1} parent=1 // pred_check
      _
    $region95: #{tpu_custom_call.1} parent=1 // pred_check_branch
      %349 = sbr.rel (0) target = $region97
    $region96: #{tpu_custom_call.1} parent=1 // pred_region
      %351 = vsyncadd [#allocation37], 0
      %s353 = sshll.u32 %s47, 4
      %s354 = int_to_ptr.hbm [resolvable:$true] %s353
      %s355 = sshll.u32 [#allocation36], 4
      %s356 = int_to_ptr.vmem [resolvable:$true] %s355
      %358 = dma.hbm_to_vmem [thread:$0]  %s354, 16, %s356, [#allocation37]
    $region97: #{tpu_custom_call.1} parent=1 // pred_fallthru
      _
    // Predicated region
    $region98: #{tpu_custom_call.1} parent=1 // pred_check
      _
    $region99: #{tpu_custom_call.1} parent=1 // pred_check_branch
      %360 = sbr.rel (0) target = $region101
    $region100: #{tpu_custom_call.1} parent=1 // pred_region
      %362 = vsyncadd [#allocation37], 0
      %s364 = sshll.u32 %s49, 4
      %s365 = int_to_ptr.hbm [resolvable:$true] %s364
      %s366 = sshll.u32 [#allocation38], 4
      %s367 = int_to_ptr.vmem [resolvable:$true] %s366
      %369 = dma.hbm_to_vmem [thread:$0]  %s365, 16, %s367, [#allocation37]
    $region101: #{tpu_custom_call.1} parent=1 // pred_fallthru
      _
    // Predicated region
    $region102: #{tpu_custom_call.1} parent=1 // pred_check
      _
    $region103: #{tpu_custom_call.1} parent=1 // pred_check_branch
      %371 = sbr.rel (0) target = $region105
    $region104: #{tpu_custom_call.1} parent=1 // pred_region
      %373 = vsyncadd [#allocation40], 0
      %s374 = sshll.u32 %s51, 4
      %s375 = int_to_ptr.hbm [resolvable:$true] %s374
      %s376 = sshll.u32 [#allocation39], 4
      %s377 = int_to_ptr.vmem [resolvable:$true] %s376
      %382 = dma.hbm_to_vmem [thread:$0]  %s375, 512, %s377, [#allocation40], 128, 128, 8
    $region105: #{tpu_custom_call.1} parent=1 // pred_fallthru
      _
    // Predicated region
    $region106: #{tpu_custom_call.1} parent=1 // pred_check
      _
    $region107: #{tpu_custom_call.1} parent=1 // pred_check_branch
      %384 = sbr.rel (0) target = $region109
    $region108: #{tpu_custom_call.1} parent=1 // pred_region
      %386 = vsyncadd [#allocation40], 0
      %s388 = sshll.u32 %s53, 4
      %s389 = int_to_ptr.hbm [resolvable:$true] %s388
      %s390 = sshll.u32 [#allocation41], 4
      %s391 = int_to_ptr.vmem [resolvable:$true] %s390
      %393 = dma.hbm_to_vmem [thread:$0]  %s389, 16, %s391, [#allocation40]
    $region109: #{tpu_custom_call.1} parent=1 // pred_fallthru
      _
    // Predicated region
    $region110: #{tpu_custom_call.1} parent=1 // pred_check
      _
    $region111: #{tpu_custom_call.1} parent=1 // pred_check_branch
      %395 = sbr.rel (0) target = $region113
    $region112: #{tpu_custom_call.1} parent=1 // pred_region
      %397 = vsyncadd [#allocation43], 0
      %s398 = sshll.u32 %s55, 4
      %s399 = int_to_ptr.hbm [resolvable:$true] %s398
      %s400 = sshll.u32 [#allocation42], 4
      %s401 = int_to_ptr.vmem [resolvable:$true] %s400
      %406 = dma.hbm_to_vmem [thread:$0]  %s399, 512, %s401, [#allocation43], 128, 128, 8
    $region113: #{tpu_custom_call.1} parent=1 // pred_fallthru
      _
    // Predicated region
    $region114: #{tpu_custom_call.1} parent=1 // pred_check
      _
    $region115: #{tpu_custom_call.1} parent=1 // pred_check_branch
      %408 = sbr.rel (0) target = $region117
    $region116: #{tpu_custom_call.1} parent=1 // pred_region
      %410 = vsyncadd [#allocation43], 0
      %s411 = sshll.u32 %s57, 4
      %s412 = int_to_ptr.hbm [resolvable:$true] %s411
      %s413 = sshll.u32 [#allocation44], 4
      %s414 = int_to_ptr.vmem [resolvable:$true] %s413
      %419 = dma.hbm_to_vmem [thread:$0]  %s412, 512, %s414, [#allocation43], 128, 128, 8
    $region117: #{tpu_custom_call.1} parent=1 // pred_fallthru
      _
    // Predicated region
    $region118: #{tpu_custom_call.1} parent=1 // pred_check
      _
    $region119: #{tpu_custom_call.1} parent=1 // pred_check_branch
      %421 = sbr.rel (0) target = $region121
    $region120: #{tpu_custom_call.1} parent=1 // pred_region
      %423 = vsyncadd [#allocation46], 0
      %s425 = sshll.u32 %s59, 4
      %s426 = int_to_ptr.hbm [resolvable:$true] %s425
      %s427 = sshll.u32 [#allocation45], 4
      %s428 = int_to_ptr.vmem [resolvable:$true] %s427
      %430 = dma.hbm_to_vmem [thread:$0]  %s426, 16, %s428, [#allocation46]
    $region121: #{tpu_custom_call.1} parent=1 // pred_fallthru
      _
    // Predicated region
    $region122: #{tpu_custom_call.1} parent=1 // pred_check
      _
    $region123: #{tpu_custom_call.1} parent=1 // pred_check_branch
      %432 = sbr.rel (0) target = $region125
    $region124: #{tpu_custom_call.1} parent=1 // pred_region
      %434 = vsyncadd [#allocation46], 0
      %s435 = sshll.u32 %s61, 4
      %s436 = int_to_ptr.hbm [resolvable:$true] %s435
      %s437 = sshll.u32 [#allocation47], 4
      %s438 = int_to_ptr.vmem [resolvable:$true] %s437
      %443 = dma.hbm_to_vmem [thread:$0]  %s436, 512, %s438, [#allocation46], 128, 128, 8
    $region125: #{tpu_custom_call.1} parent=1 // pred_fallthru
      _
    // Predicated region
    $region126: #{tpu_custom_call.1} parent=1 // pred_check
      _
    $region127: #{tpu_custom_call.1} parent=1 // pred_check_branch
      %445 = sbr.rel (0) target = $region129
    $region128: #{tpu_custom_call.1} parent=1 // pred_region
      %447 = vsyncadd [#allocation49], 0
      %s449 = sshll.u32 %s63, 4
      %s450 = int_to_ptr.hbm [resolvable:$true] %s449
      %s451 = sshll.u32 [#allocation48], 4
      %s452 = int_to_ptr.vmem [resolvable:$true] %s451
      %454 = dma.hbm_to_vmem [thread:$0]  %s450, 16, %s452, [#allocation49]
    $region129: #{tpu_custom_call.1} parent=1 // pred_fallthru
      _
    // Predicated region
    $region130: #{tpu_custom_call.1} parent=1 // pred_check
      _
    $region131: #{tpu_custom_call.1} parent=1 // pred_check_branch
      %456 = sbr.rel (0) target = $region133
    $region132: #{tpu_custom_call.1} parent=1 // pred_region
      %458 = vsyncadd [#allocation49], 0
      %s459 = sshll.u32 %s65, 4
      %s460 = int_to_ptr.hbm [resolvable:$true] %s459
      %s461 = sshll.u32 [#allocation50], 4
      %s462 = int_to_ptr.vmem [resolvable:$true] %s461
      %467 = dma.hbm_to_vmem [thread:$0]  %s460, 512, %s462, [#allocation49], 128, 128, 8
    $region133: #{tpu_custom_call.1} parent=1 // pred_fallthru
      _
    // Predicated region
    $region134: #{tpu_custom_call.1} parent=1 // pred_check
      _
    $region135: #{tpu_custom_call.1} parent=1 // pred_check_branch
      %469 = sbr.rel (0) target = $region137
    $region136: #{tpu_custom_call.1} parent=1 // pred_region
      _
    $region137: #{tpu_custom_call.1} parent=1 // pred_fallthru
      _
    // Predicated region
    $region138: #{tpu_custom_call.1} parent=1 // pred_check
      _
    $region139: #{tpu_custom_call.1} parent=1 // pred_check_branch
      %471 = sbr.rel (0) target = $region141
    $region140: #{tpu_custom_call.1} parent=1 // pred_region
      _
    $region141: #{tpu_custom_call.1} parent=1 // pred_fallthru
      _
    // Predicated region
    $region142: #{tpu_custom_call.1} parent=1 // pred_check
      _
    $region143: #{tpu_custom_call.1} parent=1 // pred_check_branch
      %473 = sbr.rel (0) target = $region145
    $region144: #{tpu_custom_call.1} parent=1 // pred_region
      _
    $region145: #{tpu_custom_call.1} parent=1 // pred_fallthru
      _
    // Predicated region
    $region146: #{tpu_custom_call.1} parent=1 // pred_check
      _
    $region147: #{tpu_custom_call.1} parent=1 // pred_check_branch
      %475 = sbr.rel (0) target = $region149
    $region148: #{tpu_custom_call.1} parent=1 // pred_region
      _
    $region149: #{tpu_custom_call.1} parent=1 // pred_fallthru
      _
    // Predicated region
    $region150: #{tpu_custom_call.1} parent=1 // pred_check
      _
    $region151: #{tpu_custom_call.1} parent=1 // pred_check_branch
      %477 = sbr.rel (0) target = $region153
    $region152: #{tpu_custom_call.1} parent=1 // pred_region
      %479 = dma.done [#allocation4], 128
    $region153: #{tpu_custom_call.1} parent=1 // pred_fallthru
      _
    // Predicated region
    $region154: #{tpu_custom_call.1} parent=1 // pred_check
      _
    $region155: #{tpu_custom_call.1} parent=1 // pred_check_branch
      %481 = sbr.rel (0) target = $region157
    $region156: #{tpu_custom_call.1} parent=1 // pred_region
      %483 = dma.done [#allocation7], 128
    $region157: #{tpu_custom_call.1} parent=1 // pred_fallthru
      _
    // Predicated region
    $region158: #{tpu_custom_call.1} parent=1 // pred_check
      _
    $region159: #{tpu_custom_call.1} parent=1 // pred_check_branch
      %485 = sbr.rel (0) target = $region161
    $region160: #{tpu_custom_call.1} parent=1 // pred_region
      %487 = dma.done [#allocation7], 128
    $region161: #{tpu_custom_call.1} parent=1 // pred_fallthru
      _
    // Predicated region
    $region162: #{tpu_custom_call.1} parent=1 // pred_check
      _
    $region163: #{tpu_custom_call.1} parent=1 // pred_check_branch
      %489 = sbr.rel (0) target = $region165
    $region164: #{tpu_custom_call.1} parent=1 // pred_region
      %491 = dma.done [#allocation10], 128
    $region165: #{tpu_custom_call.1} parent=1 // pred_fallthru
      _
    // Predicated region
    $region166: #{tpu_custom_call.1} parent=1 // pred_check
      _
    $region167: #{tpu_custom_call.1} parent=1 // pred_check_branch
      %493 = sbr.rel (0) target = $region169
    $region168: #{tpu_custom_call.1} parent=1 // pred_region
      %495 = dma.done [#allocation10], 128
    $region169: #{tpu_custom_call.1} parent=1 // pred_fallthru
      _
    // Predicated region
    $region170: #{tpu_custom_call.1} parent=1 // pred_check
      _
    $region171: #{tpu_custom_call.1} parent=1 // pred_check_branch
      %497 = sbr.rel (0) target = $region173
    $region172: #{tpu_custom_call.1} parent=1 // pred_region
      %499 = dma.done [#allocation13], 128
    $region173: #{tpu_custom_call.1} parent=1 // pred_fallthru
      _
    // Predicated region
    $region174: #{tpu_custom_call.1} parent=1 // pred_check
      _
    $region175: #{tpu_custom_call.1} parent=1 // pred_check_branch
      %501 = sbr.rel (0) target = $region177
    $region176: #{tpu_custom_call.1} parent=1 // pred_region
      %503 = dma.done [#allocation13], 512
    $region177: #{tpu_custom_call.1} parent=1 // pred_fallthru
      _
    // Predicated region
    $region178: #{tpu_custom_call.1} parent=1 // pred_check
      _
    $region179: #{tpu_custom_call.1} parent=1 // pred_check_branch
      %505 = sbr.rel (0) target = $region181
    $region180: #{tpu_custom_call.1} parent=1 // pred_region
      %507 = dma.done [#allocation16], 16
    $region181: #{tpu_custom_call.1} parent=1 // pred_fallthru
      _
    // Predicated region
    $region182: #{tpu_custom_call.1} parent=1 // pred_check
      _
    $region183: #{tpu_custom_call.1} parent=1 // pred_check_branch
      %509 = sbr.rel (0) target = $region185
    $region184: #{tpu_custom_call.1} parent=1 // pred_region
      %511 = dma.done [#allocation16], 16
    $region185: #{tpu_custom_call.1} parent=1 // pred_fallthru
      _
    // Predicated region
    $region186: #{tpu_custom_call.1} parent=1 // pred_check
      _
    $region187: #{tpu_custom_call.1} parent=1 // pred_check_branch
      %513 = sbr.rel (0) target = $region189
    $region188: #{tpu_custom_call.1} parent=1 // pred_region
      %515 = dma.done [#allocation19], 512
    $region189: #{tpu_custom_call.1} parent=1 // pred_fallthru
      _
    // Predicated region
    $region190: #{tpu_custom_call.1} parent=1 // pred_check
      _
    $region191: #{tpu_custom_call.1} parent=1 // pred_check_branch
      %517 = sbr.rel (0) target = $region193
    $region192: #{tpu_custom_call.1} parent=1 // pred_region
      %519 = dma.done [#allocation19], 16
    $region193: #{tpu_custom_call.1} parent=1 // pred_fallthru
      _
    // Predicated region
    $region194: #{tpu_custom_call.1} parent=1 // pred_check
      _
    $region195: #{tpu_custom_call.1} parent=1 // pred_check_branch
      %521 = sbr.rel (0) target = $region197
    $region196: #{tpu_custom_call.1} parent=1 // pred_region
      %523 = dma.done [#allocation22], 512
    $region197: #{tpu_custom_call.1} parent=1 // pred_fallthru
      _
    // Predicated region
    $region198: #{tpu_custom_call.1} parent=1 // pred_check
      _
    $region199: #{tpu_custom_call.1} parent=1 // pred_check_branch
      %525 = sbr.rel (0) target = $region201
    $region200: #{tpu_custom_call.1} parent=1 // pred_region
      %527 = dma.done [#allocation22], 512
    $region201: #{tpu_custom_call.1} parent=1 // pred_fallthru
      _
    // Predicated region
    $region202: #{tpu_custom_call.1} parent=1 // pred_check
      _
    $region203: #{tpu_custom_call.1} parent=1 // pred_check_branch
      %529 = sbr.rel (0) target = $region205
    $region204: #{tpu_custom_call.1} parent=1 // pred_region
      %531 = dma.done [#allocation25], 16
    $region205: #{tpu_custom_call.1} parent=1 // pred_fallthru
      _
    // Predicated region
    $region206: #{tpu_custom_call.1} parent=1 // pred_check
      _
    $region207: #{tpu_custom_call.1} parent=1 // pred_check_branch
      %533 = sbr.rel (0) target = $region209
    $region208: #{tpu_custom_call.1} parent=1 // pred_region
      %535 = dma.done [#allocation25], 16
    $region209: #{tpu_custom_call.1} parent=1 // pred_fallthru
      _
    // Predicated region
    $region210: #{tpu_custom_call.1} parent=1 // pred_check
      _
    $region211: #{tpu_custom_call.1} parent=1 // pred_check_branch
      %537 = sbr.rel (0) target = $region213
    $region212: #{tpu_custom_call.1} parent=1 // pred_region
      %539 = dma.done [#allocation28], 16
    $region213: #{tpu_custom_call.1} parent=1 // pred_fallthru
      _
    // Predicated region
    $region214: #{tpu_custom_call.1} parent=1 // pred_check
      _
    $region215: #{tpu_custom_call.1} parent=1 // pred_check_branch
      %541 = sbr.rel (0) target = $region217
    $region216: #{tpu_custom_call.1} parent=1 // pred_region
      %543 = dma.done [#allocation28], 512
    $region217: #{tpu_custom_call.1} parent=1 // pred_fallthru
      _
    // Predicated region
    $region218: #{tpu_custom_call.1} parent=1 // pred_check
      _
    $region219: #{tpu_custom_call.1} parent=1 // pred_check_branch
      %545 = sbr.rel (0) target = $region221
    $region220: #{tpu_custom_call.1} parent=1 // pred_region
      %547 = dma.done [#allocation31], 16
    $region221: #{tpu_custom_call.1} parent=1 // pred_fallthru
      _
    // Predicated region
    $region222: #{tpu_custom_call.1} parent=1 // pred_check
      _
    $region223: #{tpu_custom_call.1} parent=1 // pred_check_branch
      %549 = sbr.rel (0) target = $region225
    $region224: #{tpu_custom_call.1} parent=1 // pred_region
      %551 = dma.done [#allocation31], 512
    $region225: #{tpu_custom_call.1} parent=1 // pred_fallthru
      _
    // Predicated region
    $region226: #{tpu_custom_call.1} parent=1 // pred_check
      _
    $region227: #{tpu_custom_call.1} parent=1 // pred_check_branch
      %553 = sbr.rel (0) target = $region229
    $region228: #{tpu_custom_call.1} parent=1 // pred_region
      %555 = dma.done [#allocation34], 512
    $region229: #{tpu_custom_call.1} parent=1 // pred_fallthru
      _
    // Predicated region
    $region230: #{tpu_custom_call.1} parent=1 // pred_check
      _
    $region231: #{tpu_custom_call.1} parent=1 // pred_check_branch
      %557 = sbr.rel (0) target = $region233
    $region232: #{tpu_custom_call.1} parent=1 // pred_region
      %559 = dma.done [#allocation34], 16
    $region233: #{tpu_custom_call.1} parent=1 // pred_fallthru
      _
    // Predicated region
    $region234: #{tpu_custom_call.1} parent=1 // pred_check
      _
    $region235: #{tpu_custom_call.1} parent=1 // pred_check_branch
      %561 = sbr.rel (0) target = $region237
    $region236: #{tpu_custom_call.1} parent=1 // pred_region
      %563 = dma.done [#allocation37], 16
    $region237: #{tpu_custom_call.1} parent=1 // pred_fallthru
      _
    // Predicated region
    $region238: #{tpu_custom_call.1} parent=1 // pred_check
      _
    $region239: #{tpu_custom_call.1} parent=1 // pred_check_branch
      %565 = sbr.rel (0) target = $region241
    $region240: #{tpu_custom_call.1} parent=1 // pred_region
      %567 = dma.done [#allocation37], 16
    $region241: #{tpu_custom_call.1} parent=1 // pred_fallthru
      _
    // Predicated region
    $region242: #{tpu_custom_call.1} parent=1 // pred_check
      _
    $region243: #{tpu_custom_call.1} parent=1 // pred_check_branch
      %569 = sbr.rel (0) target = $region245
    $region244: #{tpu_custom_call.1} parent=1 // pred_region
      %571 = dma.done [#allocation40], 512
    $region245: #{tpu_custom_call.1} parent=1 // pred_fallthru
      _
    // Predicated region
    $region246: #{tpu_custom_call.1} parent=1 // pred_check
      _
    $region247: #{tpu_custom_call.1} parent=1 // pred_check_branch
      %573 = sbr.rel (0) target = $region249
    $region248: #{tpu_custom_call.1} parent=1 // pred_region
      %575 = dma.done [#allocation40], 16
    $region249: #{tpu_custom_call.1} parent=1 // pred_fallthru
      _
    // Predicated region
    $region250: #{tpu_custom_call.1} parent=1 // pred_check
      _
    $region251: #{tpu_custom_call.1} parent=1 // pred_check_branch
      %577 = sbr.rel (0) target = $region253
    $region252: #{tpu_custom_call.1} parent=1 // pred_region
      %579 = dma.done [#allocation43], 512
    $region253: #{tpu_custom_call.1} parent=1 // pred_fallthru
      _
    // Predicated region
    $region254: #{tpu_custom_call.1} parent=1 // pred_check
      _
    $region255: #{tpu_custom_call.1} parent=1 // pred_check_branch
      %581 = sbr.rel (0) target = $region257
    $region256: #{tpu_custom_call.1} parent=1 // pred_region
      %583 = dma.done [#allocation43], 512
    $region257: #{tpu_custom_call.1} parent=1 // pred_fallthru
      _
    // Predicated region
    $region258: #{tpu_custom_call.1} parent=1 // pred_check
      _
    $region259: #{tpu_custom_call.1} parent=1 // pred_check_branch
      %585 = sbr.rel (0) target = $region261
    $region260: #{tpu_custom_call.1} parent=1 // pred_region
      %587 = dma.done [#allocation46], 16
    $region261: #{tpu_custom_call.1} parent=1 // pred_fallthru
      _
    // Predicated region
    $region262: #{tpu_custom_call.1} parent=1 // pred_check
      _
    $region263: #{tpu_custom_call.1} parent=1 // pred_check_branch
      %589 = sbr.rel (0) target = $region265
    $region264: #{tpu_custom_call.1} parent=1 // pred_region
      %591 = dma.done [#allocation46], 512
    $region265: #{tpu_custom_call.1} parent=1 // pred_fallthru
      _
    // Predicated region
    $region266: #{tpu_custom_call.1} parent=1 // pred_check
      _
    $region267: #{tpu_custom_call.1} parent=1 // pred_check_branch
      %593 = sbr.rel (0) target = $region269
    $region268: #{tpu_custom_call.1} parent=1 // pred_region
      %595 = dma.done [#allocation49], 16
    $region269: #{tpu_custom_call.1} parent=1 // pred_fallthru
      _
    // Predicated region
    $region270: #{tpu_custom_call.1} parent=1 // pred_check
      _
    $region271: #{tpu_custom_call.1} parent=1 // pred_check_branch
      %597 = sbr.rel (0) target = $region273
    $region272: #{tpu_custom_call.1} parent=1 // pred_region
      %599 = dma.done [#allocation49], 512
    $region273: #{tpu_custom_call.1} parent=1 // pred_fallthru
      _
    %v600 = vld [vmem:[#allocation9] sm:$0xff]
    %v601 = vld [vmem:[#allocation3] sm:$0xff]
    %v602 = vld [vmem:[%s13] sm:$0xff]
    %v603 = vld [vmem:[%s13 + $0x8] sm:$0xff]
    %v604 = vld [vmem:[%s13 + $0x10] sm:$0xff]
    %v605 = vld [vmem:[%s13 + $0x18] sm:$0xff]
    %v606 = vld [vmem:[#allocation14] sm:$0xff]
    %v607 = vld [vmem:[#allocation14 + $0x8] sm:$0xff]
    %v608 = vld [vmem:[#allocation14 + $0x10] sm:$0xff]
    %v609 = vld [vmem:[#allocation14 + $0x18] sm:$0xff]
    %v610 = vld [vmem:[%s17] sm:$0x1]
    %vm611 = vcmask 261120
    %v613 = vsel %vm611, %v600, 0
    %615 = vmatpush.msra.mxu0 0.0
    %616 = vmatpush.msra.mxu0 0.0
    %617 = vmatpush.msra.mxu0 0.0
    %618 = vmatpush.msra.mxu0 0.0
    %619 = vmatpush.msra.mxu0 0.0
    %620 = vmatpush.msra.mxu0 0.0
    %621 = vmatpush.msra.mxu0 0.0
    %622 = vmatpush.msra.mxu0 0.0
    %623 = vmatpush.msra.mxu0 0.0
    %624 = vmatpush.msra.mxu0 0.0
    %625 = vmatpush.msra.mxu0 0.0
    %626 = vmatpush.msra.mxu0 0.0
    %627 = vmatpush.msra.mxu0 %v609
    %628 = vmatpush.msra.mxu0 %v608
    %629 = vmatpush.msra.mxu0 %v607
    %630 = vmatpush.msra.mxu0 %v606
    %631 = vmatmul.f32.gmra.mxu0 %v613
    %v632 = vpop.f32.mrf.mxu0
    %v633 = vadd.f32 0.0, %v632
    %634 = vdwg.mxu0
    %v636 = vsel %vm611, %v601, 0
    %638 = vmatpush.msra.mxu0 0.0
    %639 = vmatpush.msra.mxu0 0.0
    %640 = vmatpush.msra.mxu0 0.0
    %641 = vmatpush.msra.mxu0 0.0
    %642 = vmatpush.msra.mxu0 0.0
    %643 = vmatpush.msra.mxu0 0.0
    %644 = vmatpush.msra.mxu0 0.0
    %645 = vmatpush.msra.mxu0 0.0
    %646 = vmatpush.msra.mxu0 0.0
    %647 = vmatpush.msra.mxu0 0.0
    %648 = vmatpush.msra.mxu0 0.0
    %649 = vmatpush.msra.mxu0 0.0
    %650 = vmatpush.msra.mxu0 %v605
    %651 = vmatpush.msra.mxu0 %v604
    %652 = vmatpush.msra.mxu0 %v603
    %653 = vmatpush.msra.mxu0 %v602
    %654 = vmatmul.f32.gmra.mxu0 %v636
    %v655 = vpop.f32.mrf.mxu0
    %v656 = vadd.f32 %v633, %v655
    %657 = vdwg.mxu0
    %v659 = vperm.slane %v610, 0
    %v661 = vadd.f32 %v656, %v659
    %v662 = vsel %vm611, %v661, 0.0
    %663 = vadd.xlane.f32.xlu0 %v662
    %v664 = vpop.xlane.xlu0 %663
    %v665 = vrcp.pop 32.0
    %v666 = vmul.f32 32.0, %v665
    %v667 = vsub.f32 1.0, %v666
    %v668 = vmul.f32 %v665, %v667
    %v669 = vadd.f32 %v665, %v668
    %vm670 = vweird.f32 %v665
    %v671 = vsel %vm670, %v665, %v669
    %v672 = vmul.f32 %v664, %v671
    %v673 = vsub.f32 %v661, %v672
    %v674 = vmul.f32 %v673, %v673
    %v675 = vsel %vm611, %v674, 0.0
    %676 = vadd.xlane.f32.xlu0 %v675
    %v677 = vpop.xlane.xlu0 %676
    %v678 = vmul.f32 %v677, %v671
    %v679 = vadd.f32 %v678, 1e-05
    %v680 = vrsqrt.pop %v679
    %v681 = vmul.f32 %v680, %v679
    %v682 = vmul.f32 %v681, %v680
    %v683 = vmul.f32 0.5, %v682
    %v684 = vsub.f32 1.5, %v683
    %v685 = vmul.f32 %v680, %v684
    %vm686 = vweird.f32 %v679
    %vm687 = vweird.f32 %v680
    %vm688 = vmor %vm686, %vm687
    %v689 = vsel %vm688, %v680, %v685
    %v690 = vmul.f32 %v673, %v689
    %v691 = vld [vmem:[#allocation15] sm:$0x1]
    %v693 = vperm.slane %v691, 0
    %v695 = vmul.f32 %v690, %v693
    %v696 = vld [vmem:[#allocation17] sm:$0x1]
    %v698 = vperm.slane %v696, 0
    %v700 = vadd.f32 %v695, %v698
    %v701 = vmax.f32 %v700, 0.0
    %v702 = vld [vmem:[#allocation18] sm:$0xff]
    %v703 = vld [vmem:[#allocation18 + $0x8] sm:$0xff]
    %v704 = vld [vmem:[#allocation18 + $0x10] sm:$0xff]
    %v705 = vld [vmem:[#allocation18 + $0x18] sm:$0xff]
    %v706 = vld [vmem:[#allocation20] sm:$0x1]
    %v708 = vperm.slane %v706, 0
    %v711 = vsel %vm611, %v701, 0
    %713 = vmatpush.msra.mxu0 0.0
    %714 = vmatpush.msra.mxu0 0.0
    %715 = vmatpush.msra.mxu0 0.0
    %716 = vmatpush.msra.mxu0 0.0
    %717 = vmatpush.msra.mxu0 0.0
    %718 = vmatpush.msra.mxu0 0.0
    %719 = vmatpush.msra.mxu0 0.0
    %720 = vmatpush.msra.mxu0 0.0
    %721 = vmatpush.msra.mxu0 0.0
    %722 = vmatpush.msra.mxu0 0.0
    %723 = vmatpush.msra.mxu0 0.0
    %724 = vmatpush.msra.mxu0 0.0
    %725 = vmatpush.msra.mxu0 %v705
    %726 = vmatpush.msra.mxu0 %v704
    %727 = vmatpush.msra.mxu0 %v703
    %728 = vmatpush.msra.mxu0 %v702
    %729 = vmatmul.f32.gmra.mxu0 %v711
    %v730 = vpop.f32.mrf.mxu0
    %v731 = vadd.f32 %v708, %v730
    %732 = vdwg.mxu0
    %v733 = vld [vmem:[#allocation6] sm:$0xff]
    %v734 = vld [vmem:[#allocation21] sm:$0xff]
    %v735 = vld [vmem:[#allocation21 + $0x8] sm:$0xff]
    %v736 = vld [vmem:[#allocation21 + $0x10] sm:$0xff]
    %v737 = vld [vmem:[#allocation21 + $0x18] sm:$0xff]
    %v738 = vld [vmem:[#allocation23] sm:$0xff]
    %v739 = vld [vmem:[#allocation23 + $0x8] sm:$0xff]
    %v740 = vld [vmem:[#allocation23 + $0x10] sm:$0xff]
    %v741 = vld [vmem:[#allocation23 + $0x18] sm:$0xff]
    %v742 = vld [vmem:[#allocation24] sm:$0x1]
    %743 = vmatpush.msra.mxu0 0.0
    %744 = vmatpush.msra.mxu0 0.0
    %745 = vmatpush.msra.mxu0 0.0
    %746 = vmatpush.msra.mxu0 0.0
    %747 = vmatpush.msra.mxu0 0.0
    %748 = vmatpush.msra.mxu0 0.0
    %749 = vmatpush.msra.mxu0 0.0
    %750 = vmatpush.msra.mxu0 0.0
    %751 = vmatpush.msra.mxu0 0.0
    %752 = vmatpush.msra.mxu0 0.0
    %753 = vmatpush.msra.mxu0 0.0
    %754 = vmatpush.msra.mxu0 0.0
    %755 = vmatpush.msra.mxu0 %v741
    %756 = vmatpush.msra.mxu0 %v740
    %757 = vmatpush.msra.mxu0 %v739
    %758 = vmatpush.msra.mxu0 %v738
    %759 = vmatmul.f32.gmra.mxu0 %v613
    %v760 = vpop.f32.mrf.mxu0
    %v761 = vadd.f32 0.0, %v760
    %762 = vdwg.mxu0
    %v764 = vsel %vm611, %v733, 0
    %766 = vmatpush.msra.mxu0 0.0
    %767 = vmatpush.msra.mxu0 0.0
    %768 = vmatpush.msra.mxu0 0.0
    %769 = vmatpush.msra.mxu0 0.0
    %770 = vmatpush.msra.mxu0 0.0
    %771 = vmatpush.msra.mxu0 0.0
    %772 = vmatpush.msra.mxu0 0.0
    %773 = vmatpush.msra.mxu0 0.0
    %774 = vmatpush.msra.mxu0 0.0
    %775 = vmatpush.msra.mxu0 0.0
    %776 = vmatpush.msra.mxu0 0.0
    %777 = vmatpush.msra.mxu0 0.0
    %778 = vmatpush.msra.mxu0 %v737
    %779 = vmatpush.msra.mxu0 %v736
    %780 = vmatpush.msra.mxu0 %v735
    %781 = vmatpush.msra.mxu0 %v734
    %782 = vmatmul.f32.gmra.mxu0 %v764
    %v783 = vpop.f32.mrf.mxu0
    %v784 = vadd.f32 %v761, %v783
    %785 = vdwg.mxu0
    %v787 = vperm.slane %v742, 0
    %v789 = vadd.f32 %v784, %v787
    %v790 = vsel %vm611, %v789, 0.0
    %791 = vadd.xlane.f32.xlu0 %v790
    %v792 = vpop.xlane.xlu0 %791
    %v793 = vmul.f32 %v792, %v671
    %v794 = vsub.f32 %v789, %v793
    %v795 = vmul.f32 %v794, %v794
    %v796 = vsel %vm611, %v795, 0.0
    %797 = vadd.xlane.f32.xlu0 %v796
    %v798 = vpop.xlane.xlu0 %797
    %v799 = vmul.f32 %v798, %v671
    %v800 = vadd.f32 %v799, 1e-05
    %v801 = vrsqrt.pop %v800
    %v802 = vmul.f32 %v801, %v800
    %v803 = vmul.f32 %v802, %v801
    %v804 = vmul.f32 0.5, %v803
    %v805 = vsub.f32 1.5, %v804
    %v806 = vmul.f32 %v801, %v805
    %vm807 = vweird.f32 %v800
    %vm808 = vweird.f32 %v801
    %vm809 = vmor %vm807, %vm808
    %v810 = vsel %vm809, %v801, %v806
    %v811 = vmul.f32 %v794, %v810
    %v812 = vld [vmem:[#allocation26] sm:$0x1]
    %v814 = vperm.slane %v812, 0
    %v816 = vmul.f32 %v811, %v814
    %v817 = vld [vmem:[#allocation27] sm:$0x1]
    %v819 = vperm.slane %v817, 0
    %v821 = vadd.f32 %v816, %v819
    %v822 = vmax.f32 %v821, 0.0
    %v823 = vld [vmem:[#allocation29] sm:$0xff]
    %v824 = vld [vmem:[#allocation29 + $0x8] sm:$0xff]
    %v825 = vld [vmem:[#allocation29 + $0x10] sm:$0xff]
    %v826 = vld [vmem:[#allocation29 + $0x18] sm:$0xff]
    %v827 = vld [vmem:[#allocation30] sm:$0x1]
    %v829 = vperm.slane %v827, 0
    %v832 = vsel %vm611, %v822, 0
    %834 = vmatpush.msra.mxu0 0.0
    %835 = vmatpush.msra.mxu0 0.0
    %836 = vmatpush.msra.mxu0 0.0
    %837 = vmatpush.msra.mxu0 0.0
    %838 = vmatpush.msra.mxu0 0.0
    %839 = vmatpush.msra.mxu0 0.0
    %840 = vmatpush.msra.mxu0 0.0
    %841 = vmatpush.msra.mxu0 0.0
    %842 = vmatpush.msra.mxu0 0.0
    %843 = vmatpush.msra.mxu0 0.0
    %844 = vmatpush.msra.mxu0 0.0
    %845 = vmatpush.msra.mxu0 0.0
    %846 = vmatpush.msra.mxu0 %v826
    %847 = vmatpush.msra.mxu0 %v825
    %848 = vmatpush.msra.mxu0 %v824
    %849 = vmatpush.msra.mxu0 %v823
    %850 = vmatmul.f32.gmra.mxu0 %v832
    %v851 = vpop.f32.mrf.mxu0
    %v852 = vadd.f32 %v829, %v851
    %853 = vdwg.mxu0
    %v854 = vld [vmem:[#allocation8] sm:$0xff]
    %v855 = vld [vmem:[#allocation32] sm:$0xff]
    %v856 = vld [vmem:[#allocation32 + $0x8] sm:$0xff]
    %v857 = vld [vmem:[#allocation32 + $0x10] sm:$0xff]
    %v858 = vld [vmem:[#allocation32 + $0x18] sm:$0xff]
    %v859 = vld [vmem:[#allocation33] sm:$0xff]
    %v860 = vld [vmem:[#allocation33 + $0x8] sm:$0xff]
    %v861 = vld [vmem:[#allocation33 + $0x10] sm:$0xff]
    %v862 = vld [vmem:[#allocation33 + $0x18] sm:$0xff]
    %v863 = vld [vmem:[#allocation35] sm:$0x1]
    %864 = vmatpush.msra.mxu0 0.0
    %865 = vmatpush.msra.mxu0 0.0
    %866 = vmatpush.msra.mxu0 0.0
    %867 = vmatpush.msra.mxu0 0.0
    %868 = vmatpush.msra.mxu0 0.0
    %869 = vmatpush.msra.mxu0 0.0
    %870 = vmatpush.msra.mxu0 0.0
    %871 = vmatpush.msra.mxu0 0.0
    %872 = vmatpush.msra.mxu0 0.0
    %873 = vmatpush.msra.mxu0 0.0
    %874 = vmatpush.msra.mxu0 0.0
    %875 = vmatpush.msra.mxu0 0.0
    %876 = vmatpush.msra.mxu0 %v862
    %877 = vmatpush.msra.mxu0 %v861
    %878 = vmatpush.msra.mxu0 %v860
    %879 = vmatpush.msra.mxu0 %v859
    %880 = vmatmul.f32.gmra.mxu0 %v613
    %v881 = vpop.f32.mrf.mxu0
    %v882 = vadd.f32 0.0, %v881
    %883 = vdwg.mxu0
    %v885 = vsel %vm611, %v854, 0
    %887 = vmatpush.msra.mxu0 0.0
    %888 = vmatpush.msra.mxu0 0.0
    %889 = vmatpush.msra.mxu0 0.0
    %890 = vmatpush.msra.mxu0 0.0
    %891 = vmatpush.msra.mxu0 0.0
    %892 = vmatpush.msra.mxu0 0.0
    %893 = vmatpush.msra.mxu0 0.0
    %894 = vmatpush.msra.mxu0 0.0
    %895 = vmatpush.msra.mxu0 0.0
    %896 = vmatpush.msra.mxu0 0.0
    %897 = vmatpush.msra.mxu0 0.0
    %898 = vmatpush.msra.mxu0 0.0
    %899 = vmatpush.msra.mxu0 %v858
    %900 = vmatpush.msra.mxu0 %v857
    %901 = vmatpush.msra.mxu0 %v856
    %902 = vmatpush.msra.mxu0 %v855
    %903 = vmatmul.f32.gmra.mxu0 %v885
    %v904 = vpop.f32.mrf.mxu0
    %v905 = vadd.f32 %v882, %v904
    %906 = vdwg.mxu0
    %v908 = vperm.slane %v863, 0
    %v910 = vadd.f32 %v905, %v908
    %v911 = vsel %vm611, %v910, 0.0
    %912 = vadd.xlane.f32.xlu0 %v911
    %v913 = vpop.xlane.xlu0 %912
    %v914 = vmul.f32 %v913, %v671
    %v915 = vsub.f32 %v910, %v914
    %v916 = vmul.f32 %v915, %v915
    %v917 = vsel %vm611, %v916, 0.0
    %918 = vadd.xlane.f32.xlu0 %v917
    %v919 = vpop.xlane.xlu0 %918
    %v920 = vmul.f32 %v919, %v671
    %v921 = vadd.f32 %v920, 1e-05
    %v922 = vrsqrt.pop %v921
    %v923 = vmul.f32 %v922, %v921
    %v924 = vmul.f32 %v923, %v922
    %v925 = vmul.f32 0.5, %v924
    %v926 = vsub.f32 1.5, %v925
    %v927 = vmul.f32 %v922, %v926
    %vm928 = vweird.f32 %v921
    %vm929 = vweird.f32 %v922
    %vm930 = vmor %vm928, %vm929
    %v931 = vsel %vm930, %v922, %v927
    %v932 = vmul.f32 %v915, %v931
    %v933 = vld [vmem:[#allocation36] sm:$0x1]
    %v935 = vperm.slane %v933, 0
    %v937 = vmul.f32 %v932, %v935
    %v938 = vld [vmem:[#allocation38] sm:$0x1]
    %v940 = vperm.slane %v938, 0
    %v942 = vadd.f32 %v937, %v940
    %v943 = vmax.f32 %v942, 0.0
    %v944 = vld [vmem:[#allocation39] sm:$0xff]
    %v945 = vld [vmem:[#allocation39 + $0x8] sm:$0xff]
    %v946 = vld [vmem:[#allocation39 + $0x10] sm:$0xff]
    %v947 = vld [vmem:[#allocation39 + $0x18] sm:$0xff]
    %v948 = vld [vmem:[#allocation41] sm:$0x1]
    %v950 = vperm.slane %v948, 0
    %v953 = vsel %vm611, %v943, 0
    %955 = vmatpush.msra.mxu0 0.0
    %956 = vmatpush.msra.mxu0 0.0
    %957 = vmatpush.msra.mxu0 0.0
    %958 = vmatpush.msra.mxu0 0.0
    %959 = vmatpush.msra.mxu0 0.0
    %960 = vmatpush.msra.mxu0 0.0
    %961 = vmatpush.msra.mxu0 0.0
    %962 = vmatpush.msra.mxu0 0.0
    %963 = vmatpush.msra.mxu0 0.0
    %964 = vmatpush.msra.mxu0 0.0
    %965 = vmatpush.msra.mxu0 0.0
    %966 = vmatpush.msra.mxu0 0.0
    %967 = vmatpush.msra.mxu0 %v947
    %968 = vmatpush.msra.mxu0 %v946
    %969 = vmatpush.msra.mxu0 %v945
    %970 = vmatpush.msra.mxu0 %v944
    %971 = vmatmul.f32.gmra.mxu0 %v953
    %v972 = vpop.f32.mrf.mxu0
    %v973 = vadd.f32 %v950, %v972
    %974 = vdwg.mxu0
    %v975 = vld [vmem:[#allocation11] sm:$0xff]
    %v976 = vld [vmem:[#allocation12] sm:$0xff]
    %v977 = vld [vmem:[#allocation42] sm:$0xff]
    %v978 = vld [vmem:[#allocation42 + $0x8] sm:$0xff]
    %v979 = vld [vmem:[#allocation42 + $0x10] sm:$0xff]
    %v980 = vld [vmem:[#allocation42 + $0x18] sm:$0xff]
    %v981 = vld [vmem:[#allocation44] sm:$0xff]
    %v982 = vld [vmem:[#allocation44 + $0x8] sm:$0xff]
    %v983 = vld [vmem:[#allocation44 + $0x10] sm:$0xff]
    %v984 = vld [vmem:[#allocation44 + $0x18] sm:$0xff]
    %v985 = vld [vmem:[#allocation45] sm:$0x1]
    %v987 = vsel %vm611, %v976, 0
    %989 = vmatpush.msra.mxu0 0.0
    %990 = vmatpush.msra.mxu0 0.0
    %991 = vmatpush.msra.mxu0 0.0
    %992 = vmatpush.msra.mxu0 0.0
    %993 = vmatpush.msra.mxu0 0.0
    %994 = vmatpush.msra.mxu0 0.0
    %995 = vmatpush.msra.mxu0 0.0
    %996 = vmatpush.msra.mxu0 0.0
    %997 = vmatpush.msra.mxu0 0.0
    %998 = vmatpush.msra.mxu0 0.0
    %999 = vmatpush.msra.mxu0 0.0
    %1000 = vmatpush.msra.mxu0 0.0
    %1001 = vmatpush.msra.mxu0 %v984
    %1002 = vmatpush.msra.mxu0 %v983
    %1003 = vmatpush.msra.mxu0 %v982
    %1004 = vmatpush.msra.mxu0 %v981
    %1005 = vmatmul.f32.gmra.mxu0 %v987
    %v1006 = vpop.f32.mrf.mxu0
    %v1007 = vadd.f32 0.0, %v1006
    %1008 = vdwg.mxu0
    %v1010 = vsel %vm611, %v975, 0
    %1012 = vmatpush.msra.mxu0 0.0
    %1013 = vmatpush.msra.mxu0 0.0
    %1014 = vmatpush.msra.mxu0 0.0
    %1015 = vmatpush.msra.mxu0 0.0
    %1016 = vmatpush.msra.mxu0 0.0
    %1017 = vmatpush.msra.mxu0 0.0
    %1018 = vmatpush.msra.mxu0 0.0
    %1019 = vmatpush.msra.mxu0 0.0
    %1020 = vmatpush.msra.mxu0 0.0
    %1021 = vmatpush.msra.mxu0 0.0
    %1022 = vmatpush.msra.mxu0 0.0
    %1023 = vmatpush.msra.mxu0 0.0
    %1024 = vmatpush.msra.mxu0 %v980
    %1025 = vmatpush.msra.mxu0 %v979
    %1026 = vmatpush.msra.mxu0 %v978
    %1027 = vmatpush.msra.mxu0 %v977
    %1028 = vmatmul.f32.gmra.mxu0 %v1010
    %v1029 = vpop.f32.mrf.mxu0
    %v1030 = vadd.f32 %v1007, %v1029
    %1031 = vdwg.mxu0
    %v1033 = vperm.slane %v985, 0
    %v1035 = vadd.f32 %v1030, %v1033
    %v1036 = vmax.f32 %v1035, 0.0
    %v1037 = vld [vmem:[#allocation47] sm:$0xff]
    %v1038 = vld [vmem:[#allocation47 + $0x8] sm:$0xff]
    %v1039 = vld [vmem:[#allocation47 + $0x10] sm:$0xff]
    %v1040 = vld [vmem:[#allocation47 + $0x18] sm:$0xff]
    %v1041 = vld [vmem:[#allocation48] sm:$0x1]
    %v1043 = vperm.slane %v1041, 0
    %v1046 = vsel %vm611, %v1036, 0
    %1048 = vmatpush.msra.mxu0 0.0
    %1049 = vmatpush.msra.mxu0 0.0
    %1050 = vmatpush.msra.mxu0 0.0
    %1051 = vmatpush.msra.mxu0 0.0
    %1052 = vmatpush.msra.mxu0 0.0
    %1053 = vmatpush.msra.mxu0 0.0
    %1054 = vmatpush.msra.mxu0 0.0
    %1055 = vmatpush.msra.mxu0 0.0
    %1056 = vmatpush.msra.mxu0 0.0
    %1057 = vmatpush.msra.mxu0 0.0
    %1058 = vmatpush.msra.mxu0 0.0
    %1059 = vmatpush.msra.mxu0 0.0
    %1060 = vmatpush.msra.mxu0 %v1040
    %1061 = vmatpush.msra.mxu0 %v1039
    %1062 = vmatpush.msra.mxu0 %v1038
    %1063 = vmatpush.msra.mxu0 %v1037
    %1064 = vmatmul.f32.gmra.mxu0 %v1046
    %v1065 = vpop.f32.mrf.mxu0
    %v1066 = vadd.f32 %v1043, %v1065
    %1067 = vdwg.mxu0
    %v1069 = vsel %vm611, %v852, 0
    %1071 = vmatpush.msra.mxu0 0.0
    %1072 = vmatpush.msra.mxu0 0.0
    %1073 = vmatpush.msra.mxu0 0.0
    %1074 = vmatpush.msra.mxu0 0.0
    %1075 = vmatpush.msra.mxu0 0.0
    %1076 = vmatpush.msra.mxu0 0.0
    %1077 = vmatpush.msra.mxu0 0.0
    %1078 = vmatpush.msra.mxu0 0.0
    %1079 = vmatpush.msra.mxu0 0.0
    %1080 = vmatpush.msra.mxu0 0.0
    %1081 = vmatpush.msra.mxu0 0.0
    %1082 = vmatpush.msra.mxu0 0.0
    %1083 = vmatpush.msra.mxu0 %v984
    %1084 = vmatpush.msra.mxu0 %v983
    %1085 = vmatpush.msra.mxu0 %v982
    %1086 = vmatpush.msra.mxu0 %v981
    %1087 = vmatmul.f32.gmra.mxu0 %v1069
    %v1088 = vpop.f32.mrf.mxu0
    %v1089 = vadd.f32 0.0, %v1088
    %1090 = vdwg.mxu0
    %v1092 = vsel %vm611, %v731, 0
    %1094 = vmatpush.msra.mxu0 0.0
    %1095 = vmatpush.msra.mxu0 0.0
    %1096 = vmatpush.msra.mxu0 0.0
    %1097 = vmatpush.msra.mxu0 0.0
    %1098 = vmatpush.msra.mxu0 0.0
    %1099 = vmatpush.msra.mxu0 0.0
    %1100 = vmatpush.msra.mxu0 0.0
    %1101 = vmatpush.msra.mxu0 0.0
    %1102 = vmatpush.msra.mxu0 0.0
    %1103 = vmatpush.msra.mxu0 0.0
    %1104 = vmatpush.msra.mxu0 0.0
    %1105 = vmatpush.msra.mxu0 0.0
    %1106 = vmatpush.msra.mxu0 %v980
    %1107 = vmatpush.msra.mxu0 %v979
    %1108 = vmatpush.msra.mxu0 %v978
    %1109 = vmatpush.msra.mxu0 %v977
    %1110 = vmatmul.f32.gmra.mxu0 %v1092
    %v1111 = vpop.f32.mrf.mxu0
    %v1112 = vadd.f32 %v1089, %v1111
    %1113 = vdwg.mxu0
    %v1114 = vadd.f32 %v1112, %v1033
    %v1115 = vmax.f32 %v1114, 0.0
    %v1117 = vsel %vm611, %v1115, 0
    %1119 = vmatpush.msra.mxu0 0.0
    %1120 = vmatpush.msra.mxu0 0.0
    %1121 = vmatpush.msra.mxu0 0.0
    %1122 = vmatpush.msra.mxu0 0.0
    %1123 = vmatpush.msra.mxu0 0.0
    %1124 = vmatpush.msra.mxu0 0.0
    %1125 = vmatpush.msra.mxu0 0.0
    %1126 = vmatpush.msra.mxu0 0.0
    %1127 = vmatpush.msra.mxu0 0.0
    %1128 = vmatpush.msra.mxu0 0.0
    %1129 = vmatpush.msra.mxu0 0.0
    %1130 = vmatpush.msra.mxu0 0.0
    %1131 = vmatpush.msra.mxu0 %v1040
    %1132 = vmatpush.msra.mxu0 %v1039
    %1133 = vmatpush.msra.mxu0 %v1038
    %1134 = vmatpush.msra.mxu0 %v1037
    %1135 = vmatmul.f32.gmra.mxu0 %v1117
    %v1136 = vpop.f32.mrf.mxu0
    %v1137 = vadd.f32 %v1043, %v1136
    %1138 = vdwg.mxu0
    %v1139 = vld [vmem:[#allocation50] sm:$0xff]
    %v1140 = vld [vmem:[#allocation50 + $0x8] sm:$0xff]
    %v1141 = vld [vmem:[#allocation50 + $0x10] sm:$0xff]
    %v1142 = vld [vmem:[#allocation50 + $0x18] sm:$0xff]
    %v1143 = vld [vmem:[%s67] sm:$0xff]
    %v1144 = vld [vmem:[%s67 + $0x8] sm:$0xff]
    %v1145 = vld [vmem:[%s67 + $0x10] sm:$0xff]
    %v1146 = vld [vmem:[%s67 + $0x18] sm:$0xff]
    %v1147 = vld [vmem:[%s69] sm:$0x1]
    %v1149 = vsel %vm611, %v1137, 0
    %1151 = vmatpush.msra.mxu0 0.0
    %1152 = vmatpush.msra.mxu0 0.0
    %1153 = vmatpush.msra.mxu0 0.0
    %1154 = vmatpush.msra.mxu0 0.0
    %1155 = vmatpush.msra.mxu0 0.0
    %1156 = vmatpush.msra.mxu0 0.0
    %1157 = vmatpush.msra.mxu0 0.0
    %1158 = vmatpush.msra.mxu0 0.0
    %1159 = vmatpush.msra.mxu0 0.0
    %1160 = vmatpush.msra.mxu0 0.0
    %1161 = vmatpush.msra.mxu0 0.0
    %1162 = vmatpush.msra.mxu0 0.0
    %1163 = vmatpush.msra.mxu0 %v1146
    %1164 = vmatpush.msra.mxu0 %v1145
    %1165 = vmatpush.msra.mxu0 %v1144
    %1166 = vmatpush.msra.mxu0 %v1143
    %1167 = vmatmul.f32.gmra.mxu0 %v1149
    %v1168 = vpop.f32.mrf.mxu0
    %v1169 = vadd.f32 0.0, %v1168
    %1170 = vdwg.mxu0
    %v1172 = vsel %vm611, %v1066, 0
    %1174 = vmatpush.msra.mxu0 0.0
    %1175 = vmatpush.msra.mxu0 0.0
    %1176 = vmatpush.msra.mxu0 0.0
    %1177 = vmatpush.msra.mxu0 0.0
    %1178 = vmatpush.msra.mxu0 0.0
    %1179 = vmatpush.msra.mxu0 0.0
    %1180 = vmatpush.msra.mxu0 0.0
    %1181 = vmatpush.msra.mxu0 0.0
    %1182 = vmatpush.msra.mxu0 0.0
    %1183 = vmatpush.msra.mxu0 0.0
    %1184 = vmatpush.msra.mxu0 0.0
    %1185 = vmatpush.msra.mxu0 0.0
    %1186 = vmatpush.msra.mxu0 %v1142
    %1187 = vmatpush.msra.mxu0 %v1141
    %1188 = vmatpush.msra.mxu0 %v1140
    %1189 = vmatpush.msra.mxu0 %v1139
    %1190 = vmatmul.f32.gmra.mxu0 %v1172
    %v1191 = vpop.f32.mrf.mxu0
    %v1192 = vadd.f32 %v1169, %v1191
    %1193 = vdwg.mxu0
    %v1195 = vperm.slane %v1147, 0
    %v1197 = vadd.f32 %v1192, %v1195
    %v1198 = vmax.f32 %v1197, 0.0
    %v1199 = vld [vmem:[%s71] sm:$0xff]
    %v1200 = vld [vmem:[%s71 + $0x8] sm:$0xff]
    %v1201 = vld [vmem:[%s71 + $0x10] sm:$0xff]
    %v1202 = vld [vmem:[%s71 + $0x18] sm:$0xff]
    %v1203 = vld [vmem:[#allocation2] sm:$0x1]
    %v1205 = vperm.slane %v1203, 0
    %v1208 = vsel %vm611, %v1198, 0
    %1210 = vmatpush.msra.mxu0 0.0
    %1211 = vmatpush.msra.mxu0 0.0
    %1212 = vmatpush.msra.mxu0 0.0
    %1213 = vmatpush.msra.mxu0 0.0
    %1214 = vmatpush.msra.mxu0 0.0
    %1215 = vmatpush.msra.mxu0 0.0
    %1216 = vmatpush.msra.mxu0 0.0
    %1217 = vmatpush.msra.mxu0 0.0
    %1218 = vmatpush.msra.mxu0 0.0
    %1219 = vmatpush.msra.mxu0 0.0
    %1220 = vmatpush.msra.mxu0 0.0
    %1221 = vmatpush.msra.mxu0 0.0
    %1222 = vmatpush.msra.mxu0 %v1202
    %1223 = vmatpush.msra.mxu0 %v1201
    %1224 = vmatpush.msra.mxu0 %v1200
    %1225 = vmatpush.msra.mxu0 %v1199
    %1226 = vmatmul.f32.gmra.mxu0 %v1208
    %v1227 = vpop.f32.mrf.mxu0
    %v1228 = vadd.f32 %v1205, %v1227
    %1229 = vdwg.mxu0
    %v1230 = vxor.u32 %v1228, 2147483648
    %v1231 = vmul.f32 %v1230, 1.442695
    %v1232 = vpow.pop %v1231
    %v1233 = vadd.f32 %v1232, 1.0
    %v1234 = vrcp.pop %v1233
    %v1235 = vmul.f32 %v1233, %v1234
    %v1236 = vsub.f32 1.0, %v1235
    %v1237 = vmul.f32 %v1234, %v1236
    %v1238 = vadd.f32 %v1234, %v1237
    %vm1239 = vweird.f32 %v1233
    %vm1240 = vweird.f32 %v1234
    %vm1241 = vmor %vm1239, %vm1240
    %v1242 = vsel %vm1241, %v1234, %v1238
    %v1243 = vand.u32 2147483647, %v1233
    %vm1244 = vcmp.eq.f32.partialorder %v1243, 8.507059e+37
    %v1245 = vand.u32 %v1233, 2147483648
    %v1246 = vor.u32 1.1754944e-38, %v1245
    %v1247 = vsel %vm1244, %v1246, %v1242
    %v1248 = vmul.f32 1.0, %v1247
    %1250 = vset.pattern.permute.xlu0 0
    %1251 = vperm.xlu0 %1250, %v1248
    %v1252 = vpop.permute.xlu0 %1251
    %1254 = vrot.lane.b32.xlu0 %v852, 32
    %v1255 = vpop.permute.xlu0 %1254
    %1258 = vrot.lane.b32.xlu0 %v973, 64
    %v1259 = vpop.permute.xlu0 %1258
    %v1261 = vsel %vm611, %v731, %v1255
    %vm1262 = vcmask 523264
    %v1263 = vsel %vm1262, %v1261, %v1259
    %vm1264 = vcmask 785408
    %v1265 = vsel %vm1264, %v1263, %v1252
    %1266 = vst [vmem:[#allocation51] sm:$0xff] %v1265
    // Predicated region
    $region274: #{tpu_custom_call.1} parent=1 // pred_check
      _
    $region275: #{tpu_custom_call.1} parent=1 // pred_check_branch
      %1268 = sbr.rel (0) target = $region277
    $region276: #{tpu_custom_call.1} parent=1 // pred_region
      %1270 = vsyncadd [#allocation5], 0
      %s1272 = sshll.u32 [#allocation51], 4
      %s1273 = int_to_ptr.vmem [resolvable:$true] %s1272
      %s1274 = sshll.u32 %s75, 4
      %s1275 = int_to_ptr.hbm [resolvable:$true] %s1274
      %1277 = dma.vmem_to_hbm [thread:$0]  %s1273, 128, %s1275, [#allocation5]
    $region277: #{tpu_custom_call.1} parent=1 // pred_fallthru
      _
    // Predicated region
    $region278: #{tpu_custom_call.1} parent=1 // pred_check
      _
    $region279: #{tpu_custom_call.1} parent=1 // pred_check_branch
      %1279 = sbr.rel (0) target = $region281
    $region280: #{tpu_custom_call.1} parent=1 // pred_region
      %1281 = dma.done [#allocation5], 128
    $region281: #{tpu_custom_call.1} parent=1 // pred_fallthru
      _
    %1282 = vsyncpa [#allocation4], 1
    %1283 = vsyncpa [#allocation7], 1
    %1284 = vsyncpa [#allocation10], 1
    %1285 = vsyncpa [#allocation13], 1
    %1286 = vsyncpa [#allocation16], 1
    %1287 = vsyncpa [#allocation19], 1
    %1288 = vsyncpa [#allocation22], 1
    %1289 = vsyncpa [#allocation25], 1
    %1290 = vsyncpa [#allocation28], 1
    %1291 = vsyncpa [#allocation31], 1
    %1292 = vsyncpa [#allocation34], 1
    %1293 = vsyncpa [#allocation37], 1
    %1294 = vsyncpa [#allocation40], 1
    %1295 = vsyncpa [#allocation43], 1
    %1296 = vsyncpa [#allocation46], 1
    %1297 = vsyncpa [#allocation49], 1
    %1298 = vsyncpa [#allocation5], 1

</llo_original>
